<compile_context>
chip_gen: v7x
topology: tpu7x:2x2x1
jax: 0.10.0
libtpu: 0.0.40
codegen_flags: <defaults>
</compile_context>

<pallas_src>
import jax
import jax.numpy as jnp
from jax.experimental import pallas as pl
from jax.experimental.pallas import tpu as pltpu

NUM_TARGETS = 30  # len(targets) in the original script (QUEST-style 30 targets)


def _round_up(x, m):
    return ((x + m - 1) // m) * m


def _choose_tb(batch):
    """Batch tile: big enough to fill the MXU when the batch allows it."""
    if batch >= 256:
        return 256  # fills a 256-tall MXU (v6e/v7x); fine on v5e too
    return max(8, _round_up(batch, 8))  # sublane-aligned tiny tile for small B


def _mix_kernel(
    xe_ref, xd_ref, xf_ref, xp_ref, cat_ref,
    w1a_ref, w1b_ref, b1_ref,
    w2a_ref, w2b_ref, b2_ref,
    w3_ref, b3_ref,
    w4a_ref, w4b_ref, w4c_ref, b4_ref,
    out_ref,
):
    bf16 = jnp.bfloat16

    def mm(x_f32, w_ref):
        # bf16 MXU inputs, f32 accumulation.
        return jnp.dot(x_f32.astype(bf16), w_ref[...],
                       preferred_element_type=jnp.float32)

    # Branch 1: layer_use_embeds = Linear(cat([use_embed, use_dist]) -> 512) + ReLU
    # (concat folded into two K-slabs of w1)
    h1 = mm(xe_ref[...], w1a_ref) + mm(xd_ref[...], w1b_ref) + b1_ref[...]
    h1 = jnp.maximum(h1, 0.0)

    # Branch 2: layer_pool = Linear(cat([qa_fc, qa_pool]) -> 512) + ReLU
    h2 = mm(xf_ref[...], w2a_ref) + mm(xp_ref[...], w2b_ref) + b2_ref[...]
    h2 = jnp.maximum(h2, 0.0)

    # Branch 3: layer_cat = Linear(category -> category) + ReLU (lane-padded to 128)
    h3 = jnp.maximum(mm(cat_ref[...], w3_ref) + b3_ref[...], 0.0)

    # layer_top: Linear(concat([h1, h2, h3]) -> num_targets), concat-free,
    # output lane-padded to a multiple of 128 for unmasked stores.
    out = mm(h1, w4a_ref) + mm(h2, w4b_ref) + mm(h3, w4c_ref) + b4_ref[...]
    out_ref[...] = out.astype(out_ref.dtype)


def mix_model_forward(qa_fc, qa_pool, use_embed, use_dist, category, kparams,
                      num_targets=NUM_TARGETS):
    """Pallas-backed equivalent of MixModel.forward (eval mode: dropout = identity)."""
    B = qa_fc.shape[0]
    C = category.shape[1]
    CATP = kparams["w3"].shape[0]      # padded category width (multiple of 128)
    NP = kparams["b4"].shape[1]        # padded output width   (multiple of 128)

    TB = _choose_tb(B)
    Bp = _round_up(B, TB)
    nb = Bp // TB

    # Pad batch (and category lanes) with zeros; padded rows are computed but
    # sliced off, padded category lanes are mathematically inert.
    def pad_b(x):
        return jnp.pad(x, ((0, Bp - B), (0, 0)))

    xe, xd, xf, xp = pad_b(use_embed), pad_b(use_dist), pad_b(qa_fc), pad_b(qa_pool)
    cat_p = jnp.pad(category, ((0, Bp - B), (0, CATP - C)))

    def act_spec(d):
        return pl.BlockSpec((TB, d), lambda i: (i, 0))

    def const_spec(arr):
        shape = arr.shape
        return pl.BlockSpec(shape, lambda i: (0, 0))  # resident across the grid

    w_order = ("w1a", "w1b", "b1", "w2a", "w2b", "b2",
               "w3", "b3", "w4a", "w4b", "w4c", "b4")
    weights = [kparams[k] for k in w_order]

    in_specs = (
        [act_spec(xe.shape[1]), act_spec(xd.shape[1]),
         act_spec(xf.shape[1]), act_spec(xp.shape[1]), act_spec(CATP)]
        + [const_spec(w) for w in weights]
    )
    out_specs = pl.BlockSpec((TB, NP), lambda i: (i, 0))

    # Advisory cost estimate so XLA can schedule around this small custom call.
    flops = 2 * Bp * (
        xe.shape[1] * 512 + xd.shape[1] * 512
        + xf.shape[1] * 512 + xp.shape[1] * 512
        + CATP * CATP
        + (512 + 512 + CATP) * NP
    )
    all_inputs = [xe, xd, xf, xp, cat_p] + weights
    bytes_accessed = (sum(int(a.size) * a.dtype.itemsize for a in all_inputs)
                      + Bp * NP * 4)

    out_padded = pl.pallas_call(
        _mix_kernel,
        out_shape=jax.ShapeDtypeStruct((Bp, NP), jnp.float32),
        grid=(nb,),
        in_specs=in_specs,
        out_specs=out_specs,
        compiler_params=pltpu.CompilerParams(
            dimension_semantics=("parallel",),          # megacore on v7x
            vmem_limit_bytes=32 * 1024 * 1024,          # safe on v5e/v6e/v7x
        ),
        cost_estimate=pl.CostEstimate(
            flops=flops, transcendentals=0, bytes_accessed=bytes_accessed),
    )(xe, xd, xf, xp, cat_p, *weights)

    return out_padded[:B, :num_targets]


def init_params(key, qa_fc_size, qa_pool_size, use_embeds_size, use_dist_size,
                category_size, num_targets=NUM_TARGETS):
    """Canonical (PyTorch-layout) parameters in f32. Weights stored (in, out)."""
    ks = jax.random.split(key, 8)
    d_embeds = use_embeds_size + use_dist_size
    d_pool = qa_fc_size + qa_pool_size

    def w(k, din, dout):
        bound = 1.0 / jnp.sqrt(jnp.float32(din))
        return jax.random.uniform(k, (din, dout), jnp.float32, -bound, bound)

    def b(k, din, dout):
        bound = 1.0 / jnp.sqrt(jnp.float32(din))
        return jax.random.uniform(k, (1, dout), jnp.float32, -bound, bound)

    return {
        "w1": w(ks[0], d_embeds, 512), "b1": b(ks[1], d_embeds, 512),
        "w2": w(ks[2], d_pool, 512), "b2": b(ks[3], d_pool, 512),
        "w3": w(ks[4], category_size, category_size),
        "b3": b(ks[5], category_size, category_size),
        "w4": w(ks[6], 512 + 512 + category_size, num_targets),
        "b4": b(ks[7], 512 + 512 + category_size, num_targets),
    }


def prepare_params(params, use_embeds_size, qa_fc_size, category_size,
                   num_targets=NUM_TARGETS, weight_dtype=jnp.bfloat16):
    """Split / zero-pad / cast canonical params into the kernel layout."""
    CATP = _round_up(category_size, 128)
    NP = _round_up(num_targets, 128)
    pad_c = CATP - category_size
    pad_n = NP - num_targets

    w1, w2, w3, w4 = params["w1"], params["w2"], params["w3"], params["w4"]
    b1, b2, b3, b4 = params["b1"], params["b2"], params["b3"], params["b4"]

    wd = weight_dtype
    return {
        # concat([use_embed, use_dist]) folded into K-slabs
        "w1a": w1[:use_embeds_size].astype(wd),
        "w1b": w1[use_embeds_size:].astype(wd),
        "b1": b1.astype(jnp.float32),
        # concat([qa_fc, qa_pool]) folded into K-slabs
        "w2a": w2[:qa_fc_size].astype(wd),
        "w2b": w2[qa_fc_size:].astype(wd),
        "b2": b2.astype(jnp.float32),
        # category branch padded to 128 lanes
        "w3": jnp.pad(w3, ((0, pad_c), (0, pad_c))).astype(wd),
        "b3": jnp.pad(b3, ((0, 0), (0, pad_c))).astype(jnp.float32),
        # top layer split along the [h1 | h2 | h3] concat and lane-padded output
        "w4a": jnp.pad(w4[:512], ((0, 0), (0, pad_n))).astype(wd),
        "w4b": jnp.pad(w4[512:1024], ((0, 0), (0, pad_n))).astype(wd),
        "w4c": jnp.pad(w4[1024:], ((0, pad_c), (0, pad_n))).astype(wd),
        "b4": jnp.pad(b4, ((0, 0), (0, pad_n))).astype(jnp.float32),
    }


def mix_model_reference(qa_fc, qa_pool, use_embed, use_dist, category, params,
                        matmul_dtype=jnp.float32):
    """Pure-JAX reference (canonical params). matmul_dtype=bf16 mirrors the
    kernel's mixed-precision matmuls for a tight correctness comparison."""
    def mm(x, w):
        return jnp.dot(x.astype(matmul_dtype), w.astype(matmul_dtype),
                       preferred_element_type=jnp.float32)

    x_embeds = jnp.concatenate([use_embed, use_dist], axis=1)
    h1 = jax.nn.relu(mm(x_embeds, params["w1"]) + params["b1"])
    x_pool = jnp.concatenate([qa_fc, qa_pool], axis=1)
    h2 = jax.nn.relu(mm(x_pool, params["w2"]) + params["b2"])
    h3 = jax.nn.relu(mm(category, params["w3"]) + params["b3"])
    x = jnp.concatenate([h1, h2, h3], axis=1)
    return mm(x, params["w4"]) + params["b4"]


if __name__ == "__main__":
    # Small, forward-consistent shapes.
    batch = 8
    qa_fc_size = 64
    qa_pool_size = 64
    use_embeds_size = 64
    use_dist_size = 64
    category_size = 64

    key = jax.random.PRNGKey(0)
    k_in, k_params = jax.random.split(key)
    ki = jax.random.split(k_in, 5)

    qa_fc = jax.random.normal(ki[0], (batch, qa_fc_size), jnp.float32)
    qa_pool = jax.random.normal(ki[1], (batch, qa_pool_size), jnp.float32)
    use_embed = jax.random.normal(ki[2], (batch, use_embeds_size), jnp.float32)
    use_dist = jax.random.normal(ki[3], (batch, use_dist_size), jnp.float32)
    category = jax.random.normal(ki[4], (batch, category_size), jnp.float32)

    params = init_params(k_params, qa_fc_size, qa_pool_size,
                         use_embeds_size, use_dist_size, category_size)
    kparams = prepare_params(params, use_embeds_size, qa_fc_size, category_size)

    out = mix_model_forward(qa_fc, qa_pool, use_embed, use_dist, category, kparams)
    out = jax.block_until_ready(out)

    # Reference with the same bf16-matmul / f32-accumulate semantics as the kernel.
    ref = mix_model_reference(qa_fc, qa_pool, use_embed, use_dist, category,
                              params, matmul_dtype=jnp.bfloat16)
    assert out.shape == (batch, NUM_TARGETS)
    assert jnp.allclose(out, ref, atol=1e-2, rtol=1e-2), "mismatch vs reference"

    # TODO(synk): Dropout layers are identity here (eval mode); training-mode
    # stochastic dropout would need pltpu.prng_* inside the kernel.
    print("KERNEL_OK")
</pallas_src>

<mosaic_0001>
module attributes {stable_mosaic.version = 11 : i64} {
  func.func @_mix_kernel(%arg0: i32, %arg1: memref<8x64xf32, #tpu.memory_space<vmem>>, %arg2: memref<8x64xf32, #tpu.memory_space<vmem>>, %arg3: memref<8x64xf32, #tpu.memory_space<vmem>>, %arg4: memref<8x64xf32, #tpu.memory_space<vmem>>, %arg5: memref<8x128xf32, #tpu.memory_space<vmem>>, %arg6: memref<64x512xbf16, #tpu.memory_space<vmem>>, %arg7: memref<64x512xbf16, #tpu.memory_space<vmem>>, %arg8: memref<1x512xf32, #tpu.memory_space<vmem>>, %arg9: memref<64x512xbf16, #tpu.memory_space<vmem>>, %arg10: memref<64x512xbf16, #tpu.memory_space<vmem>>, %arg11: memref<1x512xf32, #tpu.memory_space<vmem>>, %arg12: memref<128x128xbf16, #tpu.memory_space<vmem>>, %arg13: memref<1x128xf32, #tpu.memory_space<vmem>>, %arg14: memref<512x128xbf16, #tpu.memory_space<vmem>>, %arg15: memref<512x128xbf16, #tpu.memory_space<vmem>>, %arg16: memref<128x128xbf16, #tpu.memory_space<vmem>>, %arg17: memref<1x128xf32, #tpu.memory_space<vmem>>, %arg18: memref<8x128xf32, #tpu.memory_space<vmem>>) attributes {dimension_semantics = [#tpu.dimension_semantics<parallel>], iteration_bounds = array<i64: 1>, scalar_prefetch = 0 : i64, scratch_operands = 0 : i64, tpu.core_type = #tpu.core_type<tc>, window_params = [{transform_indices = @transform_0, window_bounds = array<i64: 8, 64>}, {transform_indices = @transform_1, window_bounds = array<i64: 8, 64>}, {transform_indices = @transform_2, window_bounds = array<i64: 8, 64>}, {transform_indices = @transform_3, window_bounds = array<i64: 8, 64>}, {transform_indices = @transform_4, window_bounds = array<i64: 8, 128>}, {pipeline_mode = #tpu.pipeline_mode<synchronous>, transform_indices = @transform_5, window_bounds = array<i64: 64, 512>}, {pipeline_mode = #tpu.pipeline_mode<synchronous>, transform_indices = @transform_6, window_bounds = array<i64: 64, 512>}, {pipeline_mode = #tpu.pipeline_mode<synchronous>, transform_indices = @transform_7, window_bounds = array<i64: 1, 512>}, {pipeline_mode = #tpu.pipeline_mode<synchronous>, transform_indices = @transform_8, window_bounds = array<i64: 64, 512>}, {pipeline_mode = #tpu.pipeline_mode<synchronous>, transform_indices = @transform_9, window_bounds = array<i64: 64, 512>}, {pipeline_mode = #tpu.pipeline_mode<synchronous>, transform_indices = @transform_10, window_bounds = array<i64: 1, 512>}, {pipeline_mode = #tpu.pipeline_mode<synchronous>, transform_indices = @transform_11, window_bounds = array<i64: 128, 128>}, {pipeline_mode = #tpu.pipeline_mode<synchronous>, transform_indices = @transform_12, window_bounds = array<i64: 1, 128>}, {pipeline_mode = #tpu.pipeline_mode<synchronous>, transform_indices = @transform_13, window_bounds = array<i64: 512, 128>}, {pipeline_mode = #tpu.pipeline_mode<synchronous>, transform_indices = @transform_14, window_bounds = array<i64: 512, 128>}, {pipeline_mode = #tpu.pipeline_mode<synchronous>, transform_indices = @transform_15, window_bounds = array<i64: 128, 128>}, {pipeline_mode = #tpu.pipeline_mode<synchronous>, transform_indices = @transform_16, window_bounds = array<i64: 1, 128>}, {transform_indices = @transform_17, window_bounds = array<i64: 8, 128>}]} {
    %c0 = arith.constant 0 : index
    %c0_0 = arith.constant 0 : index
    %0 = vector.load %arg1[%c0, %c0_0] : memref<8x64xf32, #tpu.memory_space<vmem>>, vector<8x64xf32>
    %1 = arith.truncf %0 : vector<8x64xf32> to vector<8x64xbf16>
    %c0_1 = arith.constant 0 : index
    %c0_2 = arith.constant 0 : index
    %2 = vector.load %arg6[%c0_1, %c0_2] : memref<64x512xbf16, #tpu.memory_space<vmem>>, vector<64x512xbf16>
    %cst = arith.constant dense<0.000000e+00> : vector<8x512xf32>
    %3 = tpu.matmul %1, %2, %cst {dimension_numbers = #tpu.dot_dimension_numbers<[1], [0], [0], [1], [0, 0, 1, 1], [], []>} : vector<8x64xbf16>, vector<64x512xbf16>, vector<8x512xf32> -> vector<8x512xf32>
    %c0_3 = arith.constant 0 : index
    %c0_4 = arith.constant 0 : index
    %4 = vector.load %arg2[%c0_3, %c0_4] : memref<8x64xf32, #tpu.memory_space<vmem>>, vector<8x64xf32>
    %5 = arith.truncf %4 : vector<8x64xf32> to vector<8x64xbf16>
    %c0_5 = arith.constant 0 : index
    %c0_6 = arith.constant 0 : index
    %6 = vector.load %arg7[%c0_5, %c0_6] : memref<64x512xbf16, #tpu.memory_space<vmem>>, vector<64x512xbf16>
    %cst_7 = arith.constant dense<0.000000e+00> : vector<8x512xf32>
    %7 = tpu.matmul %5, %6, %cst_7 {dimension_numbers = #tpu.dot_dimension_numbers<[1], [0], [0], [1], [0, 0, 1, 1], [], []>} : vector<8x64xbf16>, vector<64x512xbf16>, vector<8x512xf32> -> vector<8x512xf32>
    %8 = arith.addf %3, %7 : vector<8x512xf32>
    %c0_8 = arith.constant 0 : index
    %c0_9 = arith.constant 0 : index
    %9 = vector.load %arg8[%c0_8, %c0_9] : memref<1x512xf32, #tpu.memory_space<vmem>>, vector<1x512xf32>
    %10 = vector.broadcast %9 : vector<1x512xf32> to vector<8x512xf32>
    %11 = arith.addf %8, %10 : vector<8x512xf32>
    %cst_10 = arith.constant 0.000000e+00 : f32
    %12 = vector.broadcast %cst_10 : f32 to vector<8x512xf32>
    %13 = arith.maximumf %11, %12 : vector<8x512xf32>
    %c0_11 = arith.constant 0 : index
    %c0_12 = arith.constant 0 : index
    %14 = vector.load %arg3[%c0_11, %c0_12] : memref<8x64xf32, #tpu.memory_space<vmem>>, vector<8x64xf32>
    %15 = arith.truncf %14 : vector<8x64xf32> to vector<8x64xbf16>
    %c0_13 = arith.constant 0 : index
    %c0_14 = arith.constant 0 : index
    %16 = vector.load %arg9[%c0_13, %c0_14] : memref<64x512xbf16, #tpu.memory_space<vmem>>, vector<64x512xbf16>
    %cst_15 = arith.constant dense<0.000000e+00> : vector<8x512xf32>
    %17 = tpu.matmul %15, %16, %cst_15 {dimension_numbers = #tpu.dot_dimension_numbers<[1], [0], [0], [1], [0, 0, 1, 1], [], []>} : vector<8x64xbf16>, vector<64x512xbf16>, vector<8x512xf32> -> vector<8x512xf32>
    %c0_16 = arith.constant 0 : index
    %c0_17 = arith.constant 0 : index
    %18 = vector.load %arg4[%c0_16, %c0_17] : memref<8x64xf32, #tpu.memory_space<vmem>>, vector<8x64xf32>
    %19 = arith.truncf %18 : vector<8x64xf32> to vector<8x64xbf16>
    %c0_18 = arith.constant 0 : index
    %c0_19 = arith.constant 0 : index
    %20 = vector.load %arg10[%c0_18, %c0_19] : memref<64x512xbf16, #tpu.memory_space<vmem>>, vector<64x512xbf16>
    %cst_20 = arith.constant dense<0.000000e+00> : vector<8x512xf32>
    %21 = tpu.matmul %19, %20, %cst_20 {dimension_numbers = #tpu.dot_dimension_numbers<[1], [0], [0], [1], [0, 0, 1, 1], [], []>} : vector<8x64xbf16>, vector<64x512xbf16>, vector<8x512xf32> -> vector<8x512xf32>
    %22 = arith.addf %17, %21 : vector<8x512xf32>
    %c0_21 = arith.constant 0 : index
    %c0_22 = arith.constant 0 : index
    %23 = vector.load %arg11[%c0_21, %c0_22] : memref<1x512xf32, #tpu.memory_space<vmem>>, vector<1x512xf32>
    %24 = vector.broadcast %23 : vector<1x512xf32> to vector<8x512xf32>
    %25 = arith.addf %22, %24 : vector<8x512xf32>
    %cst_23 = arith.constant 0.000000e+00 : f32
    %26 = vector.broadcast %cst_23 : f32 to vector<8x512xf32>
    %27 = arith.maximumf %25, %26 : vector<8x512xf32>
    %c0_24 = arith.constant 0 : index
    %c0_25 = arith.constant 0 : index
    %28 = vector.load %arg5[%c0_24, %c0_25] : memref<8x128xf32, #tpu.memory_space<vmem>>, vector<8x128xf32>
    %29 = arith.truncf %28 : vector<8x128xf32> to vector<8x128xbf16>
    %c0_26 = arith.constant 0 : index
    %c0_27 = arith.constant 0 : index
    %30 = vector.load %arg12[%c0_26, %c0_27] : memref<128x128xbf16, #tpu.memory_space<vmem>>, vector<128x128xbf16>
    %cst_28 = arith.constant dense<0.000000e+00> : vector<8x128xf32>
    %31 = tpu.matmul %29, %30, %cst_28 {dimension_numbers = #tpu.dot_dimension_numbers<[1], [0], [0], [1], [0, 0, 1, 1], [], []>} : vector<8x128xbf16>, vector<128x128xbf16>, vector<8x128xf32> -> vector<8x128xf32>
    %c0_29 = arith.constant 0 : index
    %c0_30 = arith.constant 0 : index
    %32 = vector.load %arg13[%c0_29, %c0_30] : memref<1x128xf32, #tpu.memory_space<vmem>>, vector<1x128xf32>
    %33 = vector.broadcast %32 : vector<1x128xf32> to vector<8x128xf32>
    %34 = arith.addf %31, %33 : vector<8x128xf32>
    %cst_31 = arith.constant 0.000000e+00 : f32
    %35 = vector.broadcast %cst_31 : f32 to vector<8x128xf32>
    %36 = arith.maximumf %34, %35 : vector<8x128xf32>
    %37 = arith.truncf %13 : vector<8x512xf32> to vector<8x512xbf16>
    %c0_32 = arith.constant 0 : index
    %c0_33 = arith.constant 0 : index
    %38 = vector.load %arg14[%c0_32, %c0_33] : memref<512x128xbf16, #tpu.memory_space<vmem>>, vector<512x128xbf16>
    %cst_34 = arith.constant dense<0.000000e+00> : vector<8x128xf32>
    %39 = tpu.matmul %37, %38, %cst_34 {dimension_numbers = #tpu.dot_dimension_numbers<[1], [0], [0], [1], [0, 0, 1, 1], [], []>} : vector<8x512xbf16>, vector<512x128xbf16>, vector<8x128xf32> -> vector<8x128xf32>
    %40 = arith.truncf %27 : vector<8x512xf32> to vector<8x512xbf16>
    %c0_35 = arith.constant 0 : index
    %c0_36 = arith.constant 0 : index
    %41 = vector.load %arg15[%c0_35, %c0_36] : memref<512x128xbf16, #tpu.memory_space<vmem>>, vector<512x128xbf16>
    %cst_37 = arith.constant dense<0.000000e+00> : vector<8x128xf32>
    %42 = tpu.matmul %40, %41, %cst_37 {dimension_numbers = #tpu.dot_dimension_numbers<[1], [0], [0], [1], [0, 0, 1, 1], [], []>} : vector<8x512xbf16>, vector<512x128xbf16>, vector<8x128xf32> -> vector<8x128xf32>
    %43 = arith.addf %39, %42 : vector<8x128xf32>
    %44 = arith.truncf %36 : vector<8x128xf32> to vector<8x128xbf16>
    %c0_38 = arith.constant 0 : index
    %c0_39 = arith.constant 0 : index
    %45 = vector.load %arg16[%c0_38, %c0_39] : memref<128x128xbf16, #tpu.memory_space<vmem>>, vector<128x128xbf16>
    %cst_40 = arith.constant dense<0.000000e+00> : vector<8x128xf32>
    %46 = tpu.matmul %44, %45, %cst_40 {dimension_numbers = #tpu.dot_dimension_numbers<[1], [0], [0], [1], [0, 0, 1, 1], [], []>} : vector<8x128xbf16>, vector<128x128xbf16>, vector<8x128xf32> -> vector<8x128xf32>
    %47 = arith.addf %43, %46 : vector<8x128xf32>
    %c0_41 = arith.constant 0 : index
    %c0_42 = arith.constant 0 : index
    %48 = vector.load %arg17[%c0_41, %c0_42] : memref<1x128xf32, #tpu.memory_space<vmem>>, vector<1x128xf32>
    %49 = vector.broadcast %48 : vector<1x128xf32> to vector<8x128xf32>
    %50 = arith.addf %47, %49 : vector<8x128xf32>
    %c0_43 = arith.constant 0 : index
    %c0_44 = arith.constant 0 : index
    %51 = vector.load %arg18[%c0_43, %c0_44] : memref<8x128xf32, #tpu.memory_space<vmem>>, vector<8x128xf32>
    tpu.vector_store %arg18[%c0_43, %c0_44], %50 {strides = array<i32>} : memref<8x128xf32, #tpu.memory_space<vmem>>, vector<8x128xf32>,
    return
  }
  func.func @transform_0(%arg0: i32) -> (i32, i32) {
    %c0_i32 = arith.constant 0 : i32
    %c0_i32_0 = arith.constant 0 : i32
    return %arg0, %c0_i32 : i32, i32
  }
  func.func @transform_1(%arg0: i32) -> (i32, i32) {
    %c0_i32 = arith.constant 0 : i32
    %c0_i32_0 = arith.constant 0 : i32
    return %arg0, %c0_i32 : i32, i32
  }
  func.func @transform_2(%arg0: i32) -> (i32, i32) {
    %c0_i32 = arith.constant 0 : i32
    %c0_i32_0 = arith.constant 0 : i32
    return %arg0, %c0_i32 : i32, i32
  }
  func.func @transform_3(%arg0: i32) -> (i32, i32) {
    %c0_i32 = arith.constant 0 : i32
    %c0_i32_0 = arith.constant 0 : i32
    return %arg0, %c0_i32 : i32, i32
  }
  func.func @transform_4(%arg0: i32) -> (i32, i32) {
    %c0_i32 = arith.constant 0 : i32
    %c0_i32_0 = arith.constant 0 : i32
    return %arg0, %c0_i32 : i32, i32
  }
  func.func @transform_5(%arg0: i32) -> (i32, i32) {
    %c0_i32 = arith.constant 0 : i32
    %c0_i32_0 = arith.constant 0 : i32
    %c0_i32_1 = arith.constant 0 : i32
    return %c0_i32, %c0_i32_0 : i32, i32
  }
  func.func @transform_6(%arg0: i32) -> (i32, i32) {
    %c0_i32 = arith.constant 0 : i32
    %c0_i32_0 = arith.constant 0 : i32
    %c0_i32_1 = arith.constant 0 : i32
    return %c0_i32, %c0_i32_0 : i32, i32
  }
  func.func @transform_7(%arg0: i32) -> (i32, i32) {
    %c0_i32 = arith.constant 0 : i32
    %c0_i32_0 = arith.constant 0 : i32
    %c0_i32_1 = arith.constant 0 : i32
    return %c0_i32, %c0_i32_0 : i32, i32
  }
  func.func @transform_8(%arg0: i32) -> (i32, i32) {
    %c0_i32 = arith.constant 0 : i32
    %c0_i32_0 = arith.constant 0 : i32
    %c0_i32_1 = arith.constant 0 : i32
    return %c0_i32, %c0_i32_0 : i32, i32
  }
  func.func @transform_9(%arg0: i32) -> (i32, i32) {
    %c0_i32 = arith.constant 0 : i32
    %c0_i32_0 = arith.constant 0 : i32
    %c0_i32_1 = arith.constant 0 : i32
    return %c0_i32, %c0_i32_0 : i32, i32
  }
  func.func @transform_10(%arg0: i32) -> (i32, i32) {
    %c0_i32 = arith.constant 0 : i32
    %c0_i32_0 = arith.constant 0 : i32
    %c0_i32_1 = arith.constant 0 : i32
    return %c0_i32, %c0_i32_0 : i32, i32
  }
  func.func @transform_11(%arg0: i32) -> (i32, i32) {
    %c0_i32 = arith.constant 0 : i32
    %c0_i32_0 = arith.constant 0 : i32
    %c0_i32_1 = arith.constant 0 : i32
    return %c0_i32, %c0_i32_0 : i32, i32
  }
  func.func @transform_12(%arg0: i32) -> (i32, i32) {
    %c0_i32 = arith.constant 0 : i32
    %c0_i32_0 = arith.constant 0 : i32
    %c0_i32_1 = arith.constant 0 : i32
    return %c0_i32, %c0_i32_0 : i32, i32
  }
  func.func @transform_13(%arg0: i32) -> (i32, i32) {
    %c0_i32 = arith.constant 0 : i32
    %c0_i32_0 = arith.constant 0 : i32
    %c0_i32_1 = arith.constant 0 : i32
    return %c0_i32, %c0_i32_0 : i32, i32
  }
  func.func @transform_14(%arg0: i32) -> (i32, i32) {
    %c0_i32 = arith.constant 0 : i32
    %c0_i32_0 = arith.constant 0 : i32
    %c0_i32_1 = arith.constant 0 : i32
    return %c0_i32, %c0_i32_0 : i32, i32
  }
  func.func @transform_15(%arg0: i32) -> (i32, i32) {
    %c0_i32 = arith.constant 0 : i32
    %c0_i32_0 = arith.constant 0 : i32
    %c0_i32_1 = arith.constant 0 : i32
    return %c0_i32, %c0_i32_0 : i32, i32
  }
  func.func @transform_16(%arg0: i32) -> (i32, i32) {
    %c0_i32 = arith.constant 0 : i32
    %c0_i32_0 = arith.constant 0 : i32
    %c0_i32_1 = arith.constant 0 : i32
    return %c0_i32, %c0_i32_0 : i32, i32
  }
  func.func @transform_17(%arg0: i32) -> (i32, i32) {
    %c0_i32 = arith.constant 0 : i32
    %c0_i32_0 = arith.constant 0 : i32
    return %arg0, %c0_i32 : i32, i32
  }
}

</mosaic_0001>

<llo_original>
// kernel: tpu_custom_call.1
$region0: #{tpu_custom_call.1}
  #allocation0 [shape = 'u32[]', space=smem, size = 0x4, offset = 0x4, fixed_abs, tag = 'smem constant byte address 0x4 - core index']
  #allocation1 [shape = 'u32[144,128]{1,0:T(1,128)}', space=vmem, size = 0x12000, scoped, tag = 'internal scratch']
  %s0 = inlined_call_operand.hbm [shape: f32[8,64], index: 0, kind: input, shape index: {}]
  %s1 = inlined_call_operand.hbm [shape: f32[8,64], index: 1, kind: input, shape index: {}]
  %s2 = inlined_call_operand.hbm [shape: f32[8,64], index: 2, kind: input, shape index: {}]
  %s3 = inlined_call_operand.vmem [shape: f32[8,64], index: 3, kind: input, shape index: {}]
  %s4 = inlined_call_operand.hbm [shape: f32[8,128], index: 4, kind: input, shape index: {}]
  %s5 = inlined_call_operand.hbm [shape: bf16[64,512], index: 5, kind: input, shape index: {}]
  %s6 = inlined_call_operand.hbm [shape: bf16[64,512], index: 6, kind: input, shape index: {}]
  %s7 = inlined_call_operand.vmem [shape: f32[1,512], index: 7, kind: input, shape index: {}]
  %s8 = inlined_call_operand.hbm [shape: bf16[64,512], index: 8, kind: input, shape index: {}]
  %s9 = inlined_call_operand.hbm [shape: bf16[64,512], index: 9, kind: input, shape index: {}]
  %s10 = inlined_call_operand.vmem [shape: f32[1,512], index: 10, kind: input, shape index: {}]
  %s11 = inlined_call_operand.hbm [shape: bf16[128,128], index: 11, kind: input, shape index: {}]
  %s12 = inlined_call_operand.vmem [shape: f32[1,128], index: 12, kind: input, shape index: {}]
  %s13 = inlined_call_operand.hbm [shape: bf16[512,128], index: 13, kind: input, shape index: {}]
  %s14 = inlined_call_operand.hbm [shape: bf16[512,128], index: 14, kind: input, shape index: {}]
  %s15 = inlined_call_operand.hbm [shape: bf16[128,128], index: 15, kind: input, shape index: {}]
  %s16 = inlined_call_operand.vmem [shape: f32[1,128], index: 16, kind: input, shape index: {}]
  %s17 = inlined_call_operand.hbm [shape: f32[8,128], index: 17, kind: output, shape index: {}]
  %s18 = sld [smem:[#allocation0]]
  $region126: #{tpu_custom_call.1} parent=0
    _
  %s20 = ssub.s32 1, %s18
  %s21 = scalar_select 0, %s20, %s18
  $region1: #{tpu_custom_call.1} parent=0
    #allocation2 [shape = 'u8[4096]{0}', space=vmem, size = 0x1000, scoped, tag = 'input window, operand 0, single buffered']
    #allocation3 [shape = 's32[1]{0}', space=sflag, size = 0x4, scoped, tag = 'scoped memory for tpu_custom_call.1']
    #allocation4 [shape = 's32[1]{0}', space=sflag, size = 0x4, scoped, tag = 'scoped memory for tpu_custom_call.1']
    #allocation5 [shape = 'u8[4096]{0}', space=vmem, size = 0x1000, scoped, tag = 'input window, operand 1, single buffered']
    #allocation6 [shape = 's32[1]{0}', space=sflag, size = 0x4, scoped, tag = 'scoped memory for tpu_custom_call.1']
    #allocation7 [shape = 'u8[4096]{0}', space=vmem, size = 0x1000, scoped, tag = 'input window, operand 2, single buffered']
    #allocation8 [shape = 'u8[4096]{0}', space=vmem, size = 0x1000, scoped, tag = 'input window, operand 4, single buffered']
    #allocation9 [shape = 's32[1]{0}', space=sflag, size = 0x4, scoped, tag = 'scoped memory for tpu_custom_call.1']
    #allocation10 [shape = 'u8[65536]{0}', space=vmem, size = 0x10000, scoped, tag = 'input window, operand 5, single buffered']
    #allocation11 [shape = 'u8[65536]{0}', space=vmem, size = 0x10000, scoped, tag = 'input window, operand 6, single buffered']
    #allocation12 [shape = 's32[1]{0}', space=sflag, size = 0x4, scoped, tag = 'scoped memory for tpu_custom_call.1']
    #allocation13 [shape = 'u8[65536]{0}', space=vmem, size = 0x10000, scoped, tag = 'input window, operand 8, single buffered']
    #allocation14 [shape = 'u8[65536]{0}', space=vmem, size = 0x10000, scoped, tag = 'input window, operand 9, single buffered']
    #allocation15 [shape = 's32[1]{0}', space=sflag, size = 0x4, scoped, tag = 'scoped memory for tpu_custom_call.1']
    #allocation16 [shape = 'u8[32768]{0}', space=vmem, size = 0x8000, scoped, tag = 'input window, operand 11, single buffered']
    #allocation17 [shape = 'u8[131072]{0}', space=vmem, size = 0x20000, scoped, tag = 'input window, operand 13, single buffered']
    #allocation18 [shape = 's32[1]{0}', space=sflag, size = 0x4, scoped, tag = 'scoped memory for tpu_custom_call.1']
    #allocation19 [shape = 'u8[131072]{0}', space=vmem, size = 0x20000, scoped, tag = 'input window, operand 14, single buffered']
    #allocation20 [shape = 'u8[32768]{0}', space=vmem, size = 0x8000, scoped, tag = 'input window, operand 15, single buffered']
    #allocation21 [shape = 's32[1]{0}', space=sflag, size = 0x4, scoped, tag = 'scoped memory for tpu_custom_call.1']
    #allocation22 [shape = 'u8[4096]{0}', space=vmem, size = 0x1000, scoped, tag = 'output window, operand 0, single buffered']
    %22 = vsyncpa [#allocation3], 0
    %23 = vsyncpa [#allocation6], 0
    %24 = vsyncpa [#allocation9], 0
    %25 = vsyncpa [#allocation12], 0
    %26 = vsyncpa [#allocation15], 0
    %27 = vsyncpa [#allocation18], 0
    %28 = vsyncpa [#allocation21], 0
    %29 = vsyncpa [#allocation4], 0
    // Predicated region
    $region2: #{tpu_custom_call.1} parent=1 // pred_check
      _
    $region3: #{tpu_custom_call.1} parent=1 // pred_check_branch
      %31 = sbr.rel (0) target = $region5
    $region4: #{tpu_custom_call.1} parent=1 // pred_region
      %s33 = ssub.s32 128, 128
      %34 = vsyncadd [#allocation3], %s33
      %s36 = sshll.u32 [#allocation2], 4
      %s37 = int_to_ptr.vmem [resolvable:$true] %s36
      %39 = dma.hbm_to_vmem [thread:$0]  %s0, 128, %s37, [#allocation3]
    $region5: #{tpu_custom_call.1} parent=1 // pred_fallthru
      _
    // Predicated region
    $region6: #{tpu_custom_call.1} parent=1 // pred_check
      _
    $region7: #{tpu_custom_call.1} parent=1 // pred_check_branch
      %41 = sbr.rel (0) target = $region9
    $region8: #{tpu_custom_call.1} parent=1 // pred_region
      %s43 = ssub.s32 128, 128
      %44 = vsyncadd [#allocation6], %s43
      %s46 = sshll.u32 [#allocation5], 4
      %s47 = int_to_ptr.vmem [resolvable:$true] %s46
      %49 = dma.hbm_to_vmem [thread:$0]  %s1, 128, %s47, [#allocation6]
    $region9: #{tpu_custom_call.1} parent=1 // pred_fallthru
      _
    // Predicated region
    $region10: #{tpu_custom_call.1} parent=1 // pred_check
      _
    $region11: #{tpu_custom_call.1} parent=1 // pred_check_branch
      %51 = sbr.rel (0) target = $region13
    $region12: #{tpu_custom_call.1} parent=1 // pred_region
      %s53 = ssub.s32 128, 128
      %54 = vsyncadd [#allocation6], %s53
      %s56 = sshll.u32 [#allocation7], 4
      %s57 = int_to_ptr.vmem [resolvable:$true] %s56
      %59 = dma.hbm_to_vmem [thread:$0]  %s2, 128, %s57, [#allocation6]
    $region13: #{tpu_custom_call.1} parent=1 // pred_fallthru
      _
    // Predicated region
    $region14: #{tpu_custom_call.1} parent=1 // pred_check
      _
    $region15: #{tpu_custom_call.1} parent=1 // pred_check_branch
      %61 = sbr.rel (0) target = $region17
    $region16: #{tpu_custom_call.1} parent=1 // pred_region
      _
    $region17: #{tpu_custom_call.1} parent=1 // pred_fallthru
      _
    // Predicated region
    $region18: #{tpu_custom_call.1} parent=1 // pred_check
      _
    $region19: #{tpu_custom_call.1} parent=1 // pred_check_branch
      %63 = sbr.rel (0) target = $region21
    $region20: #{tpu_custom_call.1} parent=1 // pred_region
      %s65 = ssub.s32 128, 128
      %66 = vsyncadd [#allocation9], %s65
      %s68 = sshll.u32 [#allocation8], 4
      %s69 = int_to_ptr.vmem [resolvable:$true] %s68
      %71 = dma.hbm_to_vmem [thread:$0]  %s4, 128, %s69, [#allocation9]
    $region21: #{tpu_custom_call.1} parent=1 // pred_fallthru
      _
    // Predicated region
    $region22: #{tpu_custom_call.1} parent=1 // pred_check
      _
    $region23: #{tpu_custom_call.1} parent=1 // pred_check_branch
      %73 = sbr.rel (0) target = $region25
    $region24: #{tpu_custom_call.1} parent=1 // pred_region
      %s75 = ssub.s32 2048, 2048
      %76 = vsyncadd [#allocation9], %s75
      %s77 = sshll.u32 [#allocation10], 4
      %s78 = int_to_ptr.vmem [resolvable:$true] %s77
      %83 = dma.hbm_to_vmem [thread:$0]  %s5, 2048, %s78, [#allocation9], 256, 256, 16
    $region25: #{tpu_custom_call.1} parent=1 // pred_fallthru
      _
    // Predicated region
    $region26: #{tpu_custom_call.1} parent=1 // pred_check
      _
    $region27: #{tpu_custom_call.1} parent=1 // pred_check_branch
      %85 = sbr.rel (0) target = $region29
    $region28: #{tpu_custom_call.1} parent=1 // pred_region
      %s87 = ssub.s32 2048, 2048
      %88 = vsyncadd [#allocation12], %s87
      %s89 = sshll.u32 [#allocation11], 4
      %s90 = int_to_ptr.vmem [resolvable:$true] %s89
      %95 = dma.hbm_to_vmem [thread:$0]  %s6, 2048, %s90, [#allocation12], 256, 256, 16
    $region29: #{tpu_custom_call.1} parent=1 // pred_fallthru
      _
    // Predicated region
    $region30: #{tpu_custom_call.1} parent=1 // pred_check
      _
    $region31: #{tpu_custom_call.1} parent=1 // pred_check_branch
      %97 = sbr.rel (0) target = $region33
    $region32: #{tpu_custom_call.1} parent=1 // pred_region
      _
    $region33: #{tpu_custom_call.1} parent=1 // pred_fallthru
      _
    // Predicated region
    $region34: #{tpu_custom_call.1} parent=1 // pred_check
      _
    $region35: #{tpu_custom_call.1} parent=1 // pred_check_branch
      %99 = sbr.rel (0) target = $region37
    $region36: #{tpu_custom_call.1} parent=1 // pred_region
      %s101 = ssub.s32 2048, 2048
      %102 = vsyncadd [#allocation12], %s101
      %s103 = sshll.u32 [#allocation13], 4
      %s104 = int_to_ptr.vmem [resolvable:$true] %s103
      %109 = dma.hbm_to_vmem [thread:$0]  %s8, 2048, %s104, [#allocation12], 256, 256, 16
    $region37: #{tpu_custom_call.1} parent=1 // pred_fallthru
      _
    // Predicated region
    $region38: #{tpu_custom_call.1} parent=1 // pred_check
      _
    $region39: #{tpu_custom_call.1} parent=1 // pred_check_branch
      %111 = sbr.rel (0) target = $region41
    $region40: #{tpu_custom_call.1} parent=1 // pred_region
      %s113 = ssub.s32 2048, 2048
      %114 = vsyncadd [#allocation15], %s113
      %s115 = sshll.u32 [#allocation14], 4
      %s116 = int_to_ptr.vmem [resolvable:$true] %s115
      %121 = dma.hbm_to_vmem [thread:$0]  %s9, 2048, %s116, [#allocation15], 256, 256, 16
    $region41: #{tpu_custom_call.1} parent=1 // pred_fallthru
      _
    // Predicated region
    $region42: #{tpu_custom_call.1} parent=1 // pred_check
      _
    $region43: #{tpu_custom_call.1} parent=1 // pred_check_branch
      %123 = sbr.rel (0) target = $region45
    $region44: #{tpu_custom_call.1} parent=1 // pred_region
      _
    $region45: #{tpu_custom_call.1} parent=1 // pred_fallthru
      _
    // Predicated region
    $region46: #{tpu_custom_call.1} parent=1 // pred_check
      _
    $region47: #{tpu_custom_call.1} parent=1 // pred_check_branch
      %125 = sbr.rel (0) target = $region49
    $region48: #{tpu_custom_call.1} parent=1 // pred_region
      %s127 = ssub.s32 1024, 1024
      %128 = vsyncadd [#allocation15], %s127
      %s129 = sshll.u32 [#allocation16], 4
      %s130 = int_to_ptr.vmem [resolvable:$true] %s129
      %135 = dma.hbm_to_vmem [thread:$0]  %s11, 1024, %s130, [#allocation15], 64, 64, 4
    $region49: #{tpu_custom_call.1} parent=1 // pred_fallthru
      _
    // Predicated region
    $region50: #{tpu_custom_call.1} parent=1 // pred_check
      _
    $region51: #{tpu_custom_call.1} parent=1 // pred_check_branch
      %137 = sbr.rel (0) target = $region53
    $region52: #{tpu_custom_call.1} parent=1 // pred_region
      _
    $region53: #{tpu_custom_call.1} parent=1 // pred_fallthru
      _
    // Predicated region
    $region54: #{tpu_custom_call.1} parent=1 // pred_check
      _
    $region55: #{tpu_custom_call.1} parent=1 // pred_check_branch
      %139 = sbr.rel (0) target = $region57
    $region56: #{tpu_custom_call.1} parent=1 // pred_region
      %s141 = ssub.s32 4096, 4096
      %142 = vsyncadd [#allocation18], %s141
      %s143 = sshll.u32 [#allocation17], 4
      %s144 = int_to_ptr.vmem [resolvable:$true] %s143
      %149 = dma.hbm_to_vmem [thread:$0]  %s13, 4096, %s144, [#allocation18], 64, 64, 4
    $region57: #{tpu_custom_call.1} parent=1 // pred_fallthru
      _
    // Predicated region
    $region58: #{tpu_custom_call.1} parent=1 // pred_check
      _
    $region59: #{tpu_custom_call.1} parent=1 // pred_check_branch
      %151 = sbr.rel (0) target = $region61
    $region60: #{tpu_custom_call.1} parent=1 // pred_region
      %s153 = ssub.s32 4096, 4096
      %154 = vsyncadd [#allocation18], %s153
      %s155 = sshll.u32 [#allocation19], 4
      %s156 = int_to_ptr.vmem [resolvable:$true] %s155
      %161 = dma.hbm_to_vmem [thread:$0]  %s14, 4096, %s156, [#allocation18], 64, 64, 4
    $region61: #{tpu_custom_call.1} parent=1 // pred_fallthru
      _
    // Predicated region
    $region62: #{tpu_custom_call.1} parent=1 // pred_check
      _
    $region63: #{tpu_custom_call.1} parent=1 // pred_check_branch
      %163 = sbr.rel (0) target = $region65
    $region64: #{tpu_custom_call.1} parent=1 // pred_region
      %s165 = ssub.s32 1024, 1024
      %166 = vsyncadd [#allocation21], %s165
      %s167 = sshll.u32 [#allocation20], 4
      %s168 = int_to_ptr.vmem [resolvable:$true] %s167
      %173 = dma.hbm_to_vmem [thread:$0]  %s15, 1024, %s168, [#allocation21], 64, 64, 4
    $region65: #{tpu_custom_call.1} parent=1 // pred_fallthru
      _
    // Predicated region
    $region66: #{tpu_custom_call.1} parent=1 // pred_check
      _
    $region67: #{tpu_custom_call.1} parent=1 // pred_check_branch
      %175 = sbr.rel (0) target = $region69
    $region68: #{tpu_custom_call.1} parent=1 // pred_region
      _
    $region69: #{tpu_custom_call.1} parent=1 // pred_fallthru
      _
    // Predicated region
    $region70: #{tpu_custom_call.1} parent=1 // pred_check
      _
    $region71: #{tpu_custom_call.1} parent=1 // pred_check_branch
      %177 = sbr.rel (0) target = $region73
    $region72: #{tpu_custom_call.1} parent=1 // pred_region
      %178 = dma.done [#allocation3], 128
    $region73: #{tpu_custom_call.1} parent=1 // pred_fallthru
      _
    // Predicated region
    $region74: #{tpu_custom_call.1} parent=1 // pred_check
      _
    $region75: #{tpu_custom_call.1} parent=1 // pred_check_branch
      %180 = sbr.rel (0) target = $region77
    $region76: #{tpu_custom_call.1} parent=1 // pred_region
      %181 = dma.done [#allocation6], 128
    $region77: #{tpu_custom_call.1} parent=1 // pred_fallthru
      _
    // Predicated region
    $region78: #{tpu_custom_call.1} parent=1 // pred_check
      _
    $region79: #{tpu_custom_call.1} parent=1 // pred_check_branch
      %183 = sbr.rel (0) target = $region81
    $region80: #{tpu_custom_call.1} parent=1 // pred_region
      %184 = dma.done [#allocation6], 128
    $region81: #{tpu_custom_call.1} parent=1 // pred_fallthru
      _
    // Predicated region
    $region82: #{tpu_custom_call.1} parent=1 // pred_check
      _
    $region83: #{tpu_custom_call.1} parent=1 // pred_check_branch
      %186 = sbr.rel (0) target = $region85
    $region84: #{tpu_custom_call.1} parent=1 // pred_region
      %187 = dma.done [#allocation9], 128
    $region85: #{tpu_custom_call.1} parent=1 // pred_fallthru
      _
    // Predicated region
    $region86: #{tpu_custom_call.1} parent=1 // pred_check
      _
    $region87: #{tpu_custom_call.1} parent=1 // pred_check_branch
      %189 = sbr.rel (0) target = $region89
    $region88: #{tpu_custom_call.1} parent=1 // pred_region
      %190 = dma.done [#allocation9], 2048
    $region89: #{tpu_custom_call.1} parent=1 // pred_fallthru
      _
    // Predicated region
    $region90: #{tpu_custom_call.1} parent=1 // pred_check
      _
    $region91: #{tpu_custom_call.1} parent=1 // pred_check_branch
      %192 = sbr.rel (0) target = $region93
    $region92: #{tpu_custom_call.1} parent=1 // pred_region
      %193 = dma.done [#allocation12], 2048
    $region93: #{tpu_custom_call.1} parent=1 // pred_fallthru
      _
    // Predicated region
    $region94: #{tpu_custom_call.1} parent=1 // pred_check
      _
    $region95: #{tpu_custom_call.1} parent=1 // pred_check_branch
      %195 = sbr.rel (0) target = $region97
    $region96: #{tpu_custom_call.1} parent=1 // pred_region
      %196 = dma.done [#allocation12], 2048
    $region97: #{tpu_custom_call.1} parent=1 // pred_fallthru
      _
    // Predicated region
    $region98: #{tpu_custom_call.1} parent=1 // pred_check
      _
    $region99: #{tpu_custom_call.1} parent=1 // pred_check_branch
      %198 = sbr.rel (0) target = $region101
    $region100: #{tpu_custom_call.1} parent=1 // pred_region
      %199 = dma.done [#allocation15], 2048
    $region101: #{tpu_custom_call.1} parent=1 // pred_fallthru
      _
    // Predicated region
    $region102: #{tpu_custom_call.1} parent=1 // pred_check
      _
    $region103: #{tpu_custom_call.1} parent=1 // pred_check_branch
      %201 = sbr.rel (0) target = $region105
    $region104: #{tpu_custom_call.1} parent=1 // pred_region
      %202 = dma.done [#allocation15], 1024
    $region105: #{tpu_custom_call.1} parent=1 // pred_fallthru
      _
    // Predicated region
    $region106: #{tpu_custom_call.1} parent=1 // pred_check
      _
    $region107: #{tpu_custom_call.1} parent=1 // pred_check_branch
      %204 = sbr.rel (0) target = $region109
    $region108: #{tpu_custom_call.1} parent=1 // pred_region
      %205 = dma.done [#allocation18], 4096
    $region109: #{tpu_custom_call.1} parent=1 // pred_fallthru
      _
    // Predicated region
    $region110: #{tpu_custom_call.1} parent=1 // pred_check
      _
    $region111: #{tpu_custom_call.1} parent=1 // pred_check_branch
      %207 = sbr.rel (0) target = $region113
    $region112: #{tpu_custom_call.1} parent=1 // pred_region
      %208 = dma.done [#allocation18], 4096
    $region113: #{tpu_custom_call.1} parent=1 // pred_fallthru
      _
    // Predicated region
    $region114: #{tpu_custom_call.1} parent=1 // pred_check
      _
    $region115: #{tpu_custom_call.1} parent=1 // pred_check_branch
      %210 = sbr.rel (0) target = $region117
    $region116: #{tpu_custom_call.1} parent=1 // pred_region
      %211 = dma.done [#allocation21], 1024
    $region117: #{tpu_custom_call.1} parent=1 // pred_fallthru
      _
    %v213 = vld [vmem:[#allocation2] sm:$0xff]
    %v214 = vpack.c.bf16 %v213, %v213
    %v215 = vld [vmem:[#allocation10] sm:$0xff]
    %v216 = vld [vmem:[#allocation10 + $0x8] sm:$0xff]
    %v217 = vld [vmem:[#allocation10 + $0x10] sm:$0xff]
    %v218 = vld [vmem:[#allocation10 + $0x18] sm:$0xff]
    %v219 = vld [vmem:[#allocation10 + $0x20] sm:$0xff]
    %v220 = vld [vmem:[#allocation10 + $0x28] sm:$0xff]
    %v221 = vld [vmem:[#allocation10 + $0x30] sm:$0xff]
    %v222 = vld [vmem:[#allocation10 + $0x38] sm:$0xff]
    %v223 = vld [vmem:[#allocation10 + $0x40] sm:$0xff]
    %v224 = vld [vmem:[#allocation10 + $0x48] sm:$0xff]
    %v225 = vld [vmem:[#allocation10 + $0x50] sm:$0xff]
    %v226 = vld [vmem:[#allocation10 + $0x58] sm:$0xff]
    %v227 = vld [vmem:[#allocation10 + $0x60] sm:$0xff]
    %v228 = vld [vmem:[#allocation10 + $0x68] sm:$0xff]
    %v229 = vld [vmem:[#allocation10 + $0x70] sm:$0xff]
    %v230 = vld [vmem:[#allocation10 + $0x78] sm:$0xff]
    %v231 = vld [vmem:[#allocation5] sm:$0xff]
    %v232 = vpack.c.bf16 %v231, %v231
    %v233 = vld [vmem:[#allocation11] sm:$0xff]
    %v234 = vld [vmem:[#allocation11 + $0x8] sm:$0xff]
    %v235 = vld [vmem:[#allocation11 + $0x10] sm:$0xff]
    %v236 = vld [vmem:[#allocation11 + $0x18] sm:$0xff]
    %v237 = vld [vmem:[#allocation11 + $0x20] sm:$0xff]
    %v238 = vld [vmem:[#allocation11 + $0x28] sm:$0xff]
    %v239 = vld [vmem:[#allocation11 + $0x30] sm:$0xff]
    %v240 = vld [vmem:[#allocation11 + $0x38] sm:$0xff]
    %v241 = vld [vmem:[#allocation11 + $0x40] sm:$0xff]
    %v242 = vld [vmem:[#allocation11 + $0x48] sm:$0xff]
    %v243 = vld [vmem:[#allocation11 + $0x50] sm:$0xff]
    %v244 = vld [vmem:[#allocation11 + $0x58] sm:$0xff]
    %v245 = vld [vmem:[#allocation11 + $0x60] sm:$0xff]
    %v246 = vld [vmem:[#allocation11 + $0x68] sm:$0xff]
    %v247 = vld [vmem:[#allocation11 + $0x70] sm:$0xff]
    %v248 = vld [vmem:[#allocation11 + $0x78] sm:$0xff]
    %v265 = vunpack.c.l.b16 %v233
    %v266 = vunpack.c.h.b16 %v233
    %v267 = vunpack.c.l.b16 %v234
    %v268 = vunpack.c.h.b16 %v234
    %v269 = vunpack.c.l.b16 %v235
    %v270 = vunpack.c.h.b16 %v235
    %v271 = vunpack.c.l.b16 %v236
    %v272 = vunpack.c.h.b16 %v236
    %v273 = vunpack.c.l.b16 %v237
    %v274 = vunpack.c.h.b16 %v237
    %v275 = vunpack.c.l.b16 %v238
    %v276 = vunpack.c.h.b16 %v238
    %v277 = vunpack.c.l.b16 %v239
    %v278 = vunpack.c.h.b16 %v239
    %v279 = vunpack.c.l.b16 %v240
    %v280 = vunpack.c.h.b16 %v240
    %v281 = vunpack.c.l.b16 %v241
    %v282 = vunpack.c.h.b16 %v241
    %v283 = vunpack.c.l.b16 %v242
    %v284 = vunpack.c.h.b16 %v242
    %v285 = vunpack.c.l.b16 %v243
    %v286 = vunpack.c.h.b16 %v243
    %v287 = vunpack.c.l.b16 %v244
    %v288 = vunpack.c.h.b16 %v244
    %v289 = vunpack.c.l.b16 %v245
    %v290 = vunpack.c.h.b16 %v245
    %v291 = vunpack.c.l.b16 %v246
    %v292 = vunpack.c.h.b16 %v246
    %v293 = vunpack.c.l.b16 %v247
    %v294 = vunpack.c.h.b16 %v247
    %v295 = vunpack.c.l.b16 %v248
    %v296 = vunpack.c.h.b16 %v248
    %v297 = vpack.c.b16 %v269, %v265
    %v298 = vpack.c.b16 %v270, %v266
    %v299 = vpack.c.b16 %v271, %v267
    %v300 = vpack.c.b16 %v272, %v268
    %v301 = vpack.c.b16 %v277, %v273
    %v302 = vpack.c.b16 %v278, %v274
    %v303 = vpack.c.b16 %v279, %v275
    %v304 = vpack.c.b16 %v280, %v276
    %v305 = vpack.c.b16 %v285, %v281
    %v306 = vpack.c.b16 %v286, %v282
    %v307 = vpack.c.b16 %v287, %v283
    %v308 = vpack.c.b16 %v288, %v284
    %v309 = vpack.c.b16 %v293, %v289
    %v310 = vpack.c.b16 %v294, %v290
    %v311 = vpack.c.b16 %v295, %v291
    %v312 = vpack.c.b16 %v296, %v292
    %vm329 = vcmask 523264
    %v331 = vsel %vm329, %v232, 0
    %333 = vmatprep.subr.bf16.mxu0 %v298
    %334 = vmatpush1.bf16.msra.mxu0 %v297
    %335 = vmatprep.subr.bf16.mxu0 %v302
    %336 = vmatpush1.bf16.msra.mxu0 %v301
    %337 = vmatprep.subr.bf16.mxu0 %v306
    %338 = vmatpush1.bf16.msra.mxu0 %v305
    %339 = vmatprep.subr.bf16.mxu0 %v310
    %340 = vmatpush1.bf16.msra.mxu0 %v309
    %341 = vmatprep.subr.bf16.mxu0 0
    %342 = vmatpush1.bf16.msra.mxu0 0
    %343 = vmatprep.subr.bf16.mxu0 0
    %344 = vmatpush1.bf16.msra.mxu0 0
    %345 = vmatprep.subr.bf16.mxu0 0
    %346 = vmatpush1.bf16.msra.mxu0 0
    %347 = vmatprep.subr.bf16.mxu0 0
    %348 = vmatpush1.bf16.msra.mxu0 0
    %349 = vmatprep.subr.bf16.mxu0 0
    %350 = vmatpush1.bf16.msra.mxu0 0
    %351 = vmatprep.subr.bf16.mxu0 0
    %352 = vmatpush1.bf16.msra.mxu0 0
    %353 = vmatprep.subr.bf16.mxu0 0
    %354 = vmatpush1.bf16.msra.mxu0 0
    %355 = vmatprep.subr.bf16.mxu0 0
    %356 = vmatpush1.bf16.msra.mxu0 0
    %357 = vmatprep.subr.bf16.mxu0 0
    %358 = vmatpush1.bf16.msra.mxu0 0
    %359 = vmatprep.subr.bf16.mxu0 0
    %360 = vmatpush1.bf16.msra.mxu0 0
    %361 = vmatprep.subr.bf16.mxu0 0
    %362 = vmatpush1.bf16.msra.mxu0 0
    %363 = vmatprep.subr.bf16.mxu0 0
    %364 = vmatpush1.bf16.msra.mxu0 0
    %365 = vmatprep.mubr.bf16.mxu0 0
    %366 = vmatmul.mubr.bf16.gmra.mrb[0].mxu0 %v331
    %v367 = vpop.f32.mrb[0].mxu0
    %v368 = vadd.f32 0.0, %v367
    %v369 = vpop.f32.mrb[0].mxu0
    %v370 = vadd.f32 0.0, %v369
    %v371 = vpop.f32.mrb[0].mxu0
    %v372 = vpop.f32.mrb[0].mxu0
    %373 = vdwg.mxu0
    %374 = vmatprep.subr.bf16.mxu0 %v300
    %375 = vmatpush1.bf16.msra.mxu0 %v299
    %376 = vmatprep.subr.bf16.mxu0 %v304
    %377 = vmatpush1.bf16.msra.mxu0 %v303
    %378 = vmatprep.subr.bf16.mxu0 %v308
    %379 = vmatpush1.bf16.msra.mxu0 %v307
    %380 = vmatprep.subr.bf16.mxu0 %v312
    %381 = vmatpush1.bf16.msra.mxu0 %v311
    %382 = vmatprep.subr.bf16.mxu0 0
    %383 = vmatpush1.bf16.msra.mxu0 0
    %384 = vmatprep.subr.bf16.mxu0 0
    %385 = vmatpush1.bf16.msra.mxu0 0
    %386 = vmatprep.subr.bf16.mxu0 0
    %387 = vmatpush1.bf16.msra.mxu0 0
    %388 = vmatprep.subr.bf16.mxu0 0
    %389 = vmatpush1.bf16.msra.mxu0 0
    %390 = vmatprep.subr.bf16.mxu0 0
    %391 = vmatpush1.bf16.msra.mxu0 0
    %392 = vmatprep.subr.bf16.mxu0 0
    %393 = vmatpush1.bf16.msra.mxu0 0
    %394 = vmatprep.subr.bf16.mxu0 0
    %395 = vmatpush1.bf16.msra.mxu0 0
    %396 = vmatprep.subr.bf16.mxu0 0
    %397 = vmatpush1.bf16.msra.mxu0 0
    %398 = vmatprep.subr.bf16.mxu0 0
    %399 = vmatpush1.bf16.msra.mxu0 0
    %400 = vmatprep.subr.bf16.mxu0 0
    %401 = vmatpush1.bf16.msra.mxu0 0
    %402 = vmatprep.subr.bf16.mxu0 0
    %403 = vmatpush1.bf16.msra.mxu0 0
    %404 = vmatprep.subr.bf16.mxu0 0
    %405 = vmatpush1.bf16.msra.mxu0 0
    %406 = vmatprep.mubr.bf16.mxu0 0
    %407 = vmatmul.mubr.bf16.gmra.mrb[0].mxu0 %v331
    %v408 = vpop.f32.mrb[0].mxu0
    %v409 = vadd.f32 0.0, %v408
    %v410 = vpop.f32.mrb[0].mxu0
    %v411 = vadd.f32 0.0, %v410
    %v412 = vpop.f32.mrb[0].mxu0
    %v413 = vpop.f32.mrb[0].mxu0
    %414 = vdwg.mxu0
    %v431 = vunpack.c.l.b16 %v215
    %v432 = vunpack.c.h.b16 %v215
    %v433 = vunpack.c.l.b16 %v216
    %v434 = vunpack.c.h.b16 %v216
    %v435 = vunpack.c.l.b16 %v217
    %v436 = vunpack.c.h.b16 %v217
    %v437 = vunpack.c.l.b16 %v218
    %v438 = vunpack.c.h.b16 %v218
    %v439 = vunpack.c.l.b16 %v219
    %v440 = vunpack.c.h.b16 %v219
    %v441 = vunpack.c.l.b16 %v220
    %v442 = vunpack.c.h.b16 %v220
    %v443 = vunpack.c.l.b16 %v221
    %v444 = vunpack.c.h.b16 %v221
    %v445 = vunpack.c.l.b16 %v222
    %v446 = vunpack.c.h.b16 %v222
    %v447 = vunpack.c.l.b16 %v223
    %v448 = vunpack.c.h.b16 %v223
    %v449 = vunpack.c.l.b16 %v224
    %v450 = vunpack.c.h.b16 %v224
    %v451 = vunpack.c.l.b16 %v225
    %v452 = vunpack.c.h.b16 %v225
    %v453 = vunpack.c.l.b16 %v226
    %v454 = vunpack.c.h.b16 %v226
    %v455 = vunpack.c.l.b16 %v227
    %v456 = vunpack.c.h.b16 %v227
    %v457 = vunpack.c.l.b16 %v228
    %v458 = vunpack.c.h.b16 %v228
    %v459 = vunpack.c.l.b16 %v229
    %v460 = vunpack.c.h.b16 %v229
    %v461 = vunpack.c.l.b16 %v230
    %v462 = vunpack.c.h.b16 %v230
    %v463 = vpack.c.b16 %v435, %v431
    %v464 = vpack.c.b16 %v436, %v432
    %v465 = vpack.c.b16 %v437, %v433
    %v466 = vpack.c.b16 %v438, %v434
    %v467 = vpack.c.b16 %v443, %v439
    %v468 = vpack.c.b16 %v444, %v440
    %v469 = vpack.c.b16 %v445, %v441
    %v470 = vpack.c.b16 %v446, %v442
    %v471 = vpack.c.b16 %v451, %v447
    %v472 = vpack.c.b16 %v452, %v448
    %v473 = vpack.c.b16 %v453, %v449
    %v474 = vpack.c.b16 %v454, %v450
    %v475 = vpack.c.b16 %v459, %v455
    %v476 = vpack.c.b16 %v460, %v456
    %v477 = vpack.c.b16 %v461, %v457
    %v478 = vpack.c.b16 %v462, %v458
    %v496 = vsel %vm329, %v214, 0
    %498 = vmatprep.subr.bf16.mxu0 %v464
    %499 = vmatpush1.bf16.msra.mxu0 %v463
    %500 = vmatprep.subr.bf16.mxu0 %v468
    %501 = vmatpush1.bf16.msra.mxu0 %v467
    %502 = vmatprep.subr.bf16.mxu0 %v472
    %503 = vmatpush1.bf16.msra.mxu0 %v471
    %504 = vmatprep.subr.bf16.mxu0 %v476
    %505 = vmatpush1.bf16.msra.mxu0 %v475
    %506 = vmatprep.subr.bf16.mxu0 0
    %507 = vmatpush1.bf16.msra.mxu0 0
    %508 = vmatprep.subr.bf16.mxu0 0
    %509 = vmatpush1.bf16.msra.mxu0 0
    %510 = vmatprep.subr.bf16.mxu0 0
    %511 = vmatpush1.bf16.msra.mxu0 0
    %512 = vmatprep.subr.bf16.mxu0 0
    %513 = vmatpush1.bf16.msra.mxu0 0
    %514 = vmatprep.subr.bf16.mxu0 0
    %515 = vmatpush1.bf16.msra.mxu0 0
    %516 = vmatprep.subr.bf16.mxu0 0
    %517 = vmatpush1.bf16.msra.mxu0 0
    %518 = vmatprep.subr.bf16.mxu0 0
    %519 = vmatpush1.bf16.msra.mxu0 0
    %520 = vmatprep.subr.bf16.mxu0 0
    %521 = vmatpush1.bf16.msra.mxu0 0
    %522 = vmatprep.subr.bf16.mxu0 0
    %523 = vmatpush1.bf16.msra.mxu0 0
    %524 = vmatprep.subr.bf16.mxu0 0
    %525 = vmatpush1.bf16.msra.mxu0 0
    %526 = vmatprep.subr.bf16.mxu0 0
    %527 = vmatpush1.bf16.msra.mxu0 0
    %528 = vmatprep.subr.bf16.mxu0 0
    %529 = vmatpush1.bf16.msra.mxu0 0
    %530 = vmatprep.mubr.bf16.mxu0 0
    %531 = vmatmul.mubr.bf16.gmra.mrb[0].mxu0 %v496
    %v532 = vpop.f32.mrb[0].mxu0
    %v533 = vadd.f32 %v368, %v532
    %v534 = vpop.f32.mrb[0].mxu0
    %v535 = vadd.f32 %v370, %v534
    %v536 = vpop.f32.mrb[0].mxu0
    %v537 = vpop.f32.mrb[0].mxu0
    %538 = vdwg.mxu0
    %539 = vmatprep.subr.bf16.mxu0 %v466
    %540 = vmatpush1.bf16.msra.mxu0 %v465
    %541 = vmatprep.subr.bf16.mxu0 %v470
    %542 = vmatpush1.bf16.msra.mxu0 %v469
    %543 = vmatprep.subr.bf16.mxu0 %v474
    %544 = vmatpush1.bf16.msra.mxu0 %v473
    %545 = vmatprep.subr.bf16.mxu0 %v478
    %546 = vmatpush1.bf16.msra.mxu0 %v477
    %547 = vmatprep.subr.bf16.mxu0 0
    %548 = vmatpush1.bf16.msra.mxu0 0
    %549 = vmatprep.subr.bf16.mxu0 0
    %550 = vmatpush1.bf16.msra.mxu0 0
    %551 = vmatprep.subr.bf16.mxu0 0
    %552 = vmatpush1.bf16.msra.mxu0 0
    %553 = vmatprep.subr.bf16.mxu0 0
    %554 = vmatpush1.bf16.msra.mxu0 0
    %555 = vmatprep.subr.bf16.mxu0 0
    %556 = vmatpush1.bf16.msra.mxu0 0
    %557 = vmatprep.subr.bf16.mxu0 0
    %558 = vmatpush1.bf16.msra.mxu0 0
    %559 = vmatprep.subr.bf16.mxu0 0
    %560 = vmatpush1.bf16.msra.mxu0 0
    %561 = vmatprep.subr.bf16.mxu0 0
    %562 = vmatpush1.bf16.msra.mxu0 0
    %563 = vmatprep.subr.bf16.mxu0 0
    %564 = vmatpush1.bf16.msra.mxu0 0
    %565 = vmatprep.subr.bf16.mxu0 0
    %566 = vmatpush1.bf16.msra.mxu0 0
    %567 = vmatprep.subr.bf16.mxu0 0
    %568 = vmatpush1.bf16.msra.mxu0 0
    %569 = vmatprep.subr.bf16.mxu0 0
    %570 = vmatpush1.bf16.msra.mxu0 0
    %571 = vmatprep.mubr.bf16.mxu0 0
    %572 = vmatmul.mubr.bf16.gmra.mrb[0].mxu0 %v496
    %v573 = vpop.f32.mrb[0].mxu0
    %v574 = vadd.f32 %v409, %v573
    %v575 = vpop.f32.mrb[0].mxu0
    %v576 = vadd.f32 %v411, %v575
    %v577 = vpop.f32.mrb[0].mxu0
    %v578 = vpop.f32.mrb[0].mxu0
    %579 = vdwg.mxu0
    %v580 = vld [vmem:[%s7] sm:$0xf]
    %v582 = vlaneseq
    %v583 = vshrl.u32 %v582, 7
    %v584 = vsub.s32 0, %v583
    %v585 = vrot.slane %v580, %v584
    %v586 = vlaneseq
    %v587 = vshrl.u32 %v586, 7
    %v588 = vsub.s32 1, %v587
    %v589 = vrot.slane %v580, %v588
    %v590 = vlaneseq
    %v591 = vshrl.u32 %v590, 7
    %v592 = vsub.s32 2, %v591
    %v593 = vrot.slane %v580, %v592
    %v594 = vlaneseq
    %v595 = vshrl.u32 %v594, 7
    %v596 = vsub.s32 3, %v595
    %v597 = vrot.slane %v580, %v596
    %v602 = vadd.f32 %v533, %v585
    %v603 = vadd.f32 %v535, %v589
    %v604 = vadd.f32 %v574, %v593
    %v605 = vadd.f32 %v576, %v597
    %v606 = vmax.f32 %v602, 0.0
    %v607 = vmax.f32 %v603, 0.0
    %v608 = vmax.f32 %v604, 0.0
    %v609 = vmax.f32 %v605, 0.0
    %v610 = vld [vmem:[#allocation7] sm:$0xff]
    %v611 = vpack.c.bf16 %v610, %v610
    %v612 = vld [vmem:[#allocation13] sm:$0xff]
    %v613 = vld [vmem:[#allocation13 + $0x8] sm:$0xff]
    %v614 = vld [vmem:[#allocation13 + $0x10] sm:$0xff]
    %v615 = vld [vmem:[#allocation13 + $0x18] sm:$0xff]
    %v616 = vld [vmem:[#allocation13 + $0x20] sm:$0xff]
    %v617 = vld [vmem:[#allocation13 + $0x28] sm:$0xff]
    %v618 = vld [vmem:[#allocation13 + $0x30] sm:$0xff]
    %v619 = vld [vmem:[#allocation13 + $0x38] sm:$0xff]
    %v620 = vld [vmem:[#allocation13 + $0x40] sm:$0xff]
    %v621 = vld [vmem:[#allocation13 + $0x48] sm:$0xff]
    %v622 = vld [vmem:[#allocation13 + $0x50] sm:$0xff]
    %v623 = vld [vmem:[#allocation13 + $0x58] sm:$0xff]
    %v624 = vld [vmem:[#allocation13 + $0x60] sm:$0xff]
    %v625 = vld [vmem:[#allocation13 + $0x68] sm:$0xff]
    %v626 = vld [vmem:[#allocation13 + $0x70] sm:$0xff]
    %v627 = vld [vmem:[#allocation13 + $0x78] sm:$0xff]
    %v628 = vld [vmem:[%s3] sm:$0xff]
    %v629 = vpack.c.bf16 %v628, %v628
    %v630 = vld [vmem:[#allocation14] sm:$0xff]
    %v631 = vld [vmem:[#allocation14 + $0x8] sm:$0xff]
    %v632 = vld [vmem:[#allocation14 + $0x10] sm:$0xff]
    %v633 = vld [vmem:[#allocation14 + $0x18] sm:$0xff]
    %v634 = vld [vmem:[#allocation14 + $0x20] sm:$0xff]
    %v635 = vld [vmem:[#allocation14 + $0x28] sm:$0xff]
    %v636 = vld [vmem:[#allocation14 + $0x30] sm:$0xff]
    %v637 = vld [vmem:[#allocation14 + $0x38] sm:$0xff]
    %v638 = vld [vmem:[#allocation14 + $0x40] sm:$0xff]
    %v639 = vld [vmem:[#allocation14 + $0x48] sm:$0xff]
    %v640 = vld [vmem:[#allocation14 + $0x50] sm:$0xff]
    %v641 = vld [vmem:[#allocation14 + $0x58] sm:$0xff]
    %v642 = vld [vmem:[#allocation14 + $0x60] sm:$0xff]
    %v643 = vld [vmem:[#allocation14 + $0x68] sm:$0xff]
    %v644 = vld [vmem:[#allocation14 + $0x70] sm:$0xff]
    %v645 = vld [vmem:[#allocation14 + $0x78] sm:$0xff]
    %v662 = vunpack.c.l.b16 %v630
    %v663 = vunpack.c.h.b16 %v630
    %v664 = vunpack.c.l.b16 %v631
    %v665 = vunpack.c.h.b16 %v631
    %v666 = vunpack.c.l.b16 %v632
    %v667 = vunpack.c.h.b16 %v632
    %v668 = vunpack.c.l.b16 %v633
    %v669 = vunpack.c.h.b16 %v633
    %v670 = vunpack.c.l.b16 %v634
    %v671 = vunpack.c.h.b16 %v634
    %v672 = vunpack.c.l.b16 %v635
    %v673 = vunpack.c.h.b16 %v635
    %v674 = vunpack.c.l.b16 %v636
    %v675 = vunpack.c.h.b16 %v636
    %v676 = vunpack.c.l.b16 %v637
    %v677 = vunpack.c.h.b16 %v637
    %v678 = vunpack.c.l.b16 %v638
    %v679 = vunpack.c.h.b16 %v638
    %v680 = vunpack.c.l.b16 %v639
    %v681 = vunpack.c.h.b16 %v639
    %v682 = vunpack.c.l.b16 %v640
    %v683 = vunpack.c.h.b16 %v640
    %v684 = vunpack.c.l.b16 %v641
    %v685 = vunpack.c.h.b16 %v641
    %v686 = vunpack.c.l.b16 %v642
    %v687 = vunpack.c.h.b16 %v642
    %v688 = vunpack.c.l.b16 %v643
    %v689 = vunpack.c.h.b16 %v643
    %v690 = vunpack.c.l.b16 %v644
    %v691 = vunpack.c.h.b16 %v644
    %v692 = vunpack.c.l.b16 %v645
    %v693 = vunpack.c.h.b16 %v645
    %v694 = vpack.c.b16 %v666, %v662
    %v695 = vpack.c.b16 %v667, %v663
    %v696 = vpack.c.b16 %v668, %v664
    %v697 = vpack.c.b16 %v669, %v665
    %v698 = vpack.c.b16 %v674, %v670
    %v699 = vpack.c.b16 %v675, %v671
    %v700 = vpack.c.b16 %v676, %v672
    %v701 = vpack.c.b16 %v677, %v673
    %v702 = vpack.c.b16 %v682, %v678
    %v703 = vpack.c.b16 %v683, %v679
    %v704 = vpack.c.b16 %v684, %v680
    %v705 = vpack.c.b16 %v685, %v681
    %v706 = vpack.c.b16 %v690, %v686
    %v707 = vpack.c.b16 %v691, %v687
    %v708 = vpack.c.b16 %v692, %v688
    %v709 = vpack.c.b16 %v693, %v689
    %v727 = vsel %vm329, %v629, 0
    %729 = vmatprep.subr.bf16.mxu0 %v695
    %730 = vmatpush1.bf16.msra.mxu0 %v694
    %731 = vmatprep.subr.bf16.mxu0 %v699
    %732 = vmatpush1.bf16.msra.mxu0 %v698
    %733 = vmatprep.subr.bf16.mxu0 %v703
    %734 = vmatpush1.bf16.msra.mxu0 %v702
    %735 = vmatprep.subr.bf16.mxu0 %v707
    %736 = vmatpush1.bf16.msra.mxu0 %v706
    %737 = vmatprep.subr.bf16.mxu0 0
    %738 = vmatpush1.bf16.msra.mxu0 0
    %739 = vmatprep.subr.bf16.mxu0 0
    %740 = vmatpush1.bf16.msra.mxu0 0
    %741 = vmatprep.subr.bf16.mxu0 0
    %742 = vmatpush1.bf16.msra.mxu0 0
    %743 = vmatprep.subr.bf16.mxu0 0
    %744 = vmatpush1.bf16.msra.mxu0 0
    %745 = vmatprep.subr.bf16.mxu0 0
    %746 = vmatpush1.bf16.msra.mxu0 0
    %747 = vmatprep.subr.bf16.mxu0 0
    %748 = vmatpush1.bf16.msra.mxu0 0
    %749 = vmatprep.subr.bf16.mxu0 0
    %750 = vmatpush1.bf16.msra.mxu0 0
    %751 = vmatprep.subr.bf16.mxu0 0
    %752 = vmatpush1.bf16.msra.mxu0 0
    %753 = vmatprep.subr.bf16.mxu0 0
    %754 = vmatpush1.bf16.msra.mxu0 0
    %755 = vmatprep.subr.bf16.mxu0 0
    %756 = vmatpush1.bf16.msra.mxu0 0
    %757 = vmatprep.subr.bf16.mxu0 0
    %758 = vmatpush1.bf16.msra.mxu0 0
    %759 = vmatprep.subr.bf16.mxu0 0
    %760 = vmatpush1.bf16.msra.mxu0 0
    %761 = vmatprep.mubr.bf16.mxu0 0
    %762 = vmatmul.mubr.bf16.gmra.mrb[0].mxu0 %v727
    %v763 = vpop.f32.mrb[0].mxu0
    %v764 = vadd.f32 0.0, %v763
    %v765 = vpop.f32.mrb[0].mxu0
    %v766 = vadd.f32 0.0, %v765
    %v767 = vpop.f32.mrb[0].mxu0
    %v768 = vpop.f32.mrb[0].mxu0
    %769 = vdwg.mxu0
    %770 = vmatprep.subr.bf16.mxu0 %v697
    %771 = vmatpush1.bf16.msra.mxu0 %v696
    %772 = vmatprep.subr.bf16.mxu0 %v701
    %773 = vmatpush1.bf16.msra.mxu0 %v700
    %774 = vmatprep.subr.bf16.mxu0 %v705
    %775 = vmatpush1.bf16.msra.mxu0 %v704
    %776 = vmatprep.subr.bf16.mxu0 %v709
    %777 = vmatpush1.bf16.msra.mxu0 %v708
    %778 = vmatprep.subr.bf16.mxu0 0
    %779 = vmatpush1.bf16.msra.mxu0 0
    %780 = vmatprep.subr.bf16.mxu0 0
    %781 = vmatpush1.bf16.msra.mxu0 0
    %782 = vmatprep.subr.bf16.mxu0 0
    %783 = vmatpush1.bf16.msra.mxu0 0
    %784 = vmatprep.subr.bf16.mxu0 0
    %785 = vmatpush1.bf16.msra.mxu0 0
    %786 = vmatprep.subr.bf16.mxu0 0
    %787 = vmatpush1.bf16.msra.mxu0 0
    %788 = vmatprep.subr.bf16.mxu0 0
    %789 = vmatpush1.bf16.msra.mxu0 0
    %790 = vmatprep.subr.bf16.mxu0 0
    %791 = vmatpush1.bf16.msra.mxu0 0
    %792 = vmatprep.subr.bf16.mxu0 0
    %793 = vmatpush1.bf16.msra.mxu0 0
    %794 = vmatprep.subr.bf16.mxu0 0
    %795 = vmatpush1.bf16.msra.mxu0 0
    %796 = vmatprep.subr.bf16.mxu0 0
    %797 = vmatpush1.bf16.msra.mxu0 0
    %798 = vmatprep.subr.bf16.mxu0 0
    %799 = vmatpush1.bf16.msra.mxu0 0
    %800 = vmatprep.subr.bf16.mxu0 0
    %801 = vmatpush1.bf16.msra.mxu0 0
    %802 = vmatprep.mubr.bf16.mxu0 0
    %803 = vmatmul.mubr.bf16.gmra.mrb[0].mxu0 %v727
    %v804 = vpop.f32.mrb[0].mxu0
    %v805 = vadd.f32 0.0, %v804
    %v806 = vpop.f32.mrb[0].mxu0
    %v807 = vadd.f32 0.0, %v806
    %v808 = vpop.f32.mrb[0].mxu0
    %v809 = vpop.f32.mrb[0].mxu0
    %810 = vdwg.mxu0
    %v827 = vunpack.c.l.b16 %v612
    %v828 = vunpack.c.h.b16 %v612
    %v829 = vunpack.c.l.b16 %v613
    %v830 = vunpack.c.h.b16 %v613
    %v831 = vunpack.c.l.b16 %v614
    %v832 = vunpack.c.h.b16 %v614
    %v833 = vunpack.c.l.b16 %v615
    %v834 = vunpack.c.h.b16 %v615
    %v835 = vunpack.c.l.b16 %v616
    %v836 = vunpack.c.h.b16 %v616
    %v837 = vunpack.c.l.b16 %v617
    %v838 = vunpack.c.h.b16 %v617
    %v839 = vunpack.c.l.b16 %v618
    %v840 = vunpack.c.h.b16 %v618
    %v841 = vunpack.c.l.b16 %v619
    %v842 = vunpack.c.h.b16 %v619
    %v843 = vunpack.c.l.b16 %v620
    %v844 = vunpack.c.h.b16 %v620
    %v845 = vunpack.c.l.b16 %v621
    %v846 = vunpack.c.h.b16 %v621
    %v847 = vunpack.c.l.b16 %v622
    %v848 = vunpack.c.h.b16 %v622
    %v849 = vunpack.c.l.b16 %v623
    %v850 = vunpack.c.h.b16 %v623
    %v851 = vunpack.c.l.b16 %v624
    %v852 = vunpack.c.h.b16 %v624
    %v853 = vunpack.c.l.b16 %v625
    %v854 = vunpack.c.h.b16 %v625
    %v855 = vunpack.c.l.b16 %v626
    %v856 = vunpack.c.h.b16 %v626
    %v857 = vunpack.c.l.b16 %v627
    %v858 = vunpack.c.h.b16 %v627
    %v859 = vpack.c.b16 %v831, %v827
    %v860 = vpack.c.b16 %v832, %v828
    %v861 = vpack.c.b16 %v833, %v829
    %v862 = vpack.c.b16 %v834, %v830
    %v863 = vpack.c.b16 %v839, %v835
    %v864 = vpack.c.b16 %v840, %v836
    %v865 = vpack.c.b16 %v841, %v837
    %v866 = vpack.c.b16 %v842, %v838
    %v867 = vpack.c.b16 %v847, %v843
    %v868 = vpack.c.b16 %v848, %v844
    %v869 = vpack.c.b16 %v849, %v845
    %v870 = vpack.c.b16 %v850, %v846
    %v871 = vpack.c.b16 %v855, %v851
    %v872 = vpack.c.b16 %v856, %v852
    %v873 = vpack.c.b16 %v857, %v853
    %v874 = vpack.c.b16 %v858, %v854
    %v892 = vsel %vm329, %v611, 0
    %894 = vmatprep.subr.bf16.mxu0 %v860
    %895 = vmatpush1.bf16.msra.mxu0 %v859
    %896 = vmatprep.subr.bf16.mxu0 %v864
    %897 = vmatpush1.bf16.msra.mxu0 %v863
    %898 = vmatprep.subr.bf16.mxu0 %v868
    %899 = vmatpush1.bf16.msra.mxu0 %v867
    %900 = vmatprep.subr.bf16.mxu0 %v872
    %901 = vmatpush1.bf16.msra.mxu0 %v871
    %902 = vmatprep.subr.bf16.mxu0 0
    %903 = vmatpush1.bf16.msra.mxu0 0
    %904 = vmatprep.subr.bf16.mxu0 0
    %905 = vmatpush1.bf16.msra.mxu0 0
    %906 = vmatprep.subr.bf16.mxu0 0
    %907 = vmatpush1.bf16.msra.mxu0 0
    %908 = vmatprep.subr.bf16.mxu0 0
    %909 = vmatpush1.bf16.msra.mxu0 0
    %910 = vmatprep.subr.bf16.mxu0 0
    %911 = vmatpush1.bf16.msra.mxu0 0
    %912 = vmatprep.subr.bf16.mxu0 0
    %913 = vmatpush1.bf16.msra.mxu0 0
    %914 = vmatprep.subr.bf16.mxu0 0
    %915 = vmatpush1.bf16.msra.mxu0 0
    %916 = vmatprep.subr.bf16.mxu0 0
    %917 = vmatpush1.bf16.msra.mxu0 0
    %918 = vmatprep.subr.bf16.mxu0 0
    %919 = vmatpush1.bf16.msra.mxu0 0
    %920 = vmatprep.subr.bf16.mxu0 0
    %921 = vmatpush1.bf16.msra.mxu0 0
    %922 = vmatprep.subr.bf16.mxu0 0
    %923 = vmatpush1.bf16.msra.mxu0 0
    %924 = vmatprep.subr.bf16.mxu0 0
    %925 = vmatpush1.bf16.msra.mxu0 0
    %926 = vmatprep.mubr.bf16.mxu0 0
    %927 = vmatmul.mubr.bf16.gmra.mrb[0].mxu0 %v892
    %v928 = vpop.f32.mrb[0].mxu0
    %v929 = vadd.f32 %v764, %v928
    %v930 = vpop.f32.mrb[0].mxu0
    %v931 = vadd.f32 %v766, %v930
    %v932 = vpop.f32.mrb[0].mxu0
    %v933 = vpop.f32.mrb[0].mxu0
    %934 = vdwg.mxu0
    %935 = vmatprep.subr.bf16.mxu0 %v862
    %936 = vmatpush1.bf16.msra.mxu0 %v861
    %937 = vmatprep.subr.bf16.mxu0 %v866
    %938 = vmatpush1.bf16.msra.mxu0 %v865
    %939 = vmatprep.subr.bf16.mxu0 %v870
    %940 = vmatpush1.bf16.msra.mxu0 %v869
    %941 = vmatprep.subr.bf16.mxu0 %v874
    %942 = vmatpush1.bf16.msra.mxu0 %v873
    %943 = vmatprep.subr.bf16.mxu0 0
    %944 = vmatpush1.bf16.msra.mxu0 0
    %945 = vmatprep.subr.bf16.mxu0 0
    %946 = vmatpush1.bf16.msra.mxu0 0
    %947 = vmatprep.subr.bf16.mxu0 0
    %948 = vmatpush1.bf16.msra.mxu0 0
    %949 = vmatprep.subr.bf16.mxu0 0
    %950 = vmatpush1.bf16.msra.mxu0 0
    %951 = vmatprep.subr.bf16.mxu0 0
    %952 = vmatpush1.bf16.msra.mxu0 0
    %953 = vmatprep.subr.bf16.mxu0 0
    %954 = vmatpush1.bf16.msra.mxu0 0
    %955 = vmatprep.subr.bf16.mxu0 0
    %956 = vmatpush1.bf16.msra.mxu0 0
    %957 = vmatprep.subr.bf16.mxu0 0
    %958 = vmatpush1.bf16.msra.mxu0 0
    %959 = vmatprep.subr.bf16.mxu0 0
    %960 = vmatpush1.bf16.msra.mxu0 0
    %961 = vmatprep.subr.bf16.mxu0 0
    %962 = vmatpush1.bf16.msra.mxu0 0
    %963 = vmatprep.subr.bf16.mxu0 0
    %964 = vmatpush1.bf16.msra.mxu0 0
    %965 = vmatprep.subr.bf16.mxu0 0
    %966 = vmatpush1.bf16.msra.mxu0 0
    %967 = vmatprep.mubr.bf16.mxu0 0
    %968 = vmatmul.mubr.bf16.gmra.mrb[0].mxu0 %v892
    %v969 = vpop.f32.mrb[0].mxu0
    %v970 = vadd.f32 %v805, %v969
    %v971 = vpop.f32.mrb[0].mxu0
    %v972 = vadd.f32 %v807, %v971
    %v973 = vpop.f32.mrb[0].mxu0
    %v974 = vpop.f32.mrb[0].mxu0
    %975 = vdwg.mxu0
    %v976 = vld [vmem:[%s10] sm:$0xf]
    %v978 = vlaneseq
    %v979 = vshrl.u32 %v978, 7
    %v980 = vsub.s32 0, %v979
    %v981 = vrot.slane %v976, %v980
    %v982 = vlaneseq
    %v983 = vshrl.u32 %v982, 7
    %v984 = vsub.s32 1, %v983
    %v985 = vrot.slane %v976, %v984
    %v986 = vlaneseq
    %v987 = vshrl.u32 %v986, 7
    %v988 = vsub.s32 2, %v987
    %v989 = vrot.slane %v976, %v988
    %v990 = vlaneseq
    %v991 = vshrl.u32 %v990, 7
    %v992 = vsub.s32 3, %v991
    %v993 = vrot.slane %v976, %v992
    %v998 = vadd.f32 %v929, %v981
    %v999 = vadd.f32 %v931, %v985
    %v1000 = vadd.f32 %v970, %v989
    %v1001 = vadd.f32 %v972, %v993
    %v1002 = vmax.f32 %v998, 0.0
    %v1003 = vmax.f32 %v999, 0.0
    %v1004 = vmax.f32 %v1000, 0.0
    %v1005 = vmax.f32 %v1001, 0.0
    %v1006 = vld [vmem:[#allocation8] sm:$0xff]
    %v1007 = vpack.c.bf16 %v1006, %v1006
    %v1008 = vld [vmem:[#allocation16] sm:$0xf]
    %v1009 = vld [vmem:[#allocation16 + $0x4] sm:$0xf]
    %v1010 = vld [vmem:[#allocation16 + $0x8] sm:$0xf]
    %v1011 = vld [vmem:[#allocation16 + $0xc] sm:$0xf]
    %v1012 = vld [vmem:[#allocation16 + $0x10] sm:$0xf]
    %v1013 = vld [vmem:[#allocation16 + $0x14] sm:$0xf]
    %v1014 = vld [vmem:[#allocation16 + $0x18] sm:$0xf]
    %v1015 = vld [vmem:[#allocation16 + $0x1c] sm:$0xf]
    %v1016 = vld [vmem:[#allocation16 + $0x20] sm:$0xf]
    %v1017 = vld [vmem:[#allocation16 + $0x24] sm:$0xf]
    %v1018 = vld [vmem:[#allocation16 + $0x28] sm:$0xf]
    %v1019 = vld [vmem:[#allocation16 + $0x2c] sm:$0xf]
    %v1020 = vld [vmem:[#allocation16 + $0x30] sm:$0xf]
    %v1021 = vld [vmem:[#allocation16 + $0x34] sm:$0xf]
    %v1022 = vld [vmem:[#allocation16 + $0x38] sm:$0xf]
    %v1023 = vld [vmem:[#allocation16 + $0x3c] sm:$0xf]
    %v1024 = vld [vmem:[%s12] sm:$0x1]
    %v1026 = vlaneseq
    %v1027 = vshrl.u32 %v1026, 7
    %v1028 = vsub.s32 0, %v1027
    %v1029 = vrot.slane %v1024, %v1028
    %v1047 = vunpack.c.l.b16 %v1008
    %v1048 = vunpack.c.l.b16 %v1009
    %v1049 = vunpack.c.l.b16 %v1010
    %v1050 = vunpack.c.l.b16 %v1011
    %v1051 = vunpack.c.l.b16 %v1012
    %v1052 = vunpack.c.l.b16 %v1013
    %v1053 = vunpack.c.l.b16 %v1014
    %v1054 = vunpack.c.l.b16 %v1015
    %v1055 = vunpack.c.l.b16 %v1016
    %v1056 = vunpack.c.l.b16 %v1017
    %v1057 = vunpack.c.l.b16 %v1018
    %v1058 = vunpack.c.l.b16 %v1019
    %v1059 = vunpack.c.l.b16 %v1020
    %v1060 = vunpack.c.l.b16 %v1021
    %v1061 = vunpack.c.l.b16 %v1022
    %v1062 = vunpack.c.l.b16 %v1023
    %v1063 = vpack.c.b16 %v1048, %v1047
    %v1064 = vpack.c.b16 %v1050, %v1049
    %v1065 = vpack.c.b16 %v1052, %v1051
    %v1066 = vpack.c.b16 %v1054, %v1053
    %v1067 = vpack.c.b16 %v1056, %v1055
    %v1068 = vpack.c.b16 %v1058, %v1057
    %v1069 = vpack.c.b16 %v1060, %v1059
    %v1070 = vpack.c.b16 %v1062, %v1061
    %1079 = vmatprep.subr.bf16.mxu0 0
    %1080 = vmatpush1.bf16.msra.mxu0 %v1063
    %1081 = vmatprep.subr.bf16.mxu0 0
    %1082 = vmatpush1.bf16.msra.mxu0 %v1064
    %1083 = vmatprep.subr.bf16.mxu0 0
    %1084 = vmatpush1.bf16.msra.mxu0 %v1065
    %1085 = vmatprep.subr.bf16.mxu0 0
    %1086 = vmatpush1.bf16.msra.mxu0 %v1066
    %1087 = vmatprep.subr.bf16.mxu0 0
    %1088 = vmatpush1.bf16.msra.mxu0 %v1067
    %1089 = vmatprep.subr.bf16.mxu0 0
    %1090 = vmatpush1.bf16.msra.mxu0 %v1068
    %1091 = vmatprep.subr.bf16.mxu0 0
    %1092 = vmatpush1.bf16.msra.mxu0 %v1069
    %1093 = vmatprep.subr.bf16.mxu0 0
    %1094 = vmatpush1.bf16.msra.mxu0 %v1070
    %1095 = vmatprep.subr.bf16.mxu0 0
    %1096 = vmatpush1.bf16.msra.mxu0 0
    %1097 = vmatprep.subr.bf16.mxu0 0
    %1098 = vmatpush1.bf16.msra.mxu0 0
    %1099 = vmatprep.subr.bf16.mxu0 0
    %1100 = vmatpush1.bf16.msra.mxu0 0
    %1101 = vmatprep.subr.bf16.mxu0 0
    %1102 = vmatpush1.bf16.msra.mxu0 0
    %1103 = vmatprep.subr.bf16.mxu0 0
    %1104 = vmatpush1.bf16.msra.mxu0 0
    %1105 = vmatprep.subr.bf16.mxu0 0
    %1106 = vmatpush1.bf16.msra.mxu0 0
    %1107 = vmatprep.subr.bf16.mxu0 0
    %1108 = vmatpush1.bf16.msra.mxu0 0
    %1109 = vmatprep.subr.bf16.mxu0 0
    %1110 = vmatpush1.bf16.msra.mxu0 0
    %1111 = vmatprep.mubr.bf16.mxu0 0
    %1112 = vmatmul.mubr.bf16.gmra.mrb[0].mxu0 %v1007
    %v1113 = vpop.f32.mrb[0].mxu0
    %v1114 = vadd.f32 %v1029, %v1113
    %v1115 = vpop.f32.mrb[0].mxu0
    %v1116 = vpop.f32.mrb[0].mxu0
    %v1117 = vpop.f32.mrb[0].mxu0
    %1118 = vdwg.mxu0
    %v1119 = vmax.f32 %v1114, 0.0
    %v1120 = vpack.c.bf16 %v606, %v606
    %v1121 = vpack.c.bf16 %v607, %v607
    %v1122 = vpack.c.bf16 %v608, %v608
    %v1123 = vpack.c.bf16 %v609, %v609
    %v1124 = vld [vmem:[#allocation17] sm:$0xf]
    %v1125 = vld [vmem:[#allocation17 + $0x4] sm:$0xf]
    %v1126 = vld [vmem:[#allocation17 + $0x8] sm:$0xf]
    %v1127 = vld [vmem:[#allocation17 + $0xc] sm:$0xf]
    %v1128 = vld [vmem:[#allocation17 + $0x10] sm:$0xf]
    %v1129 = vld [vmem:[#allocation17 + $0x14] sm:$0xf]
    %v1130 = vld [vmem:[#allocation17 + $0x18] sm:$0xf]
    %v1131 = vld [vmem:[#allocation17 + $0x1c] sm:$0xf]
    %v1132 = vld [vmem:[#allocation17 + $0x20] sm:$0xf]
    %v1133 = vld [vmem:[#allocation17 + $0x24] sm:$0xf]
    %v1134 = vld [vmem:[#allocation17 + $0x28] sm:$0xf]
    %v1135 = vld [vmem:[#allocation17 + $0x2c] sm:$0xf]
    %v1136 = vld [vmem:[#allocation17 + $0x30] sm:$0xf]
    %v1137 = vld [vmem:[#allocation17 + $0x34] sm:$0xf]
    %v1138 = vld [vmem:[#allocation17 + $0x38] sm:$0xf]
    %v1139 = vld [vmem:[#allocation17 + $0x3c] sm:$0xf]
    %v1140 = vld [vmem:[#allocation17 + $0x40] sm:$0xf]
    %v1141 = vld [vmem:[#allocation17 + $0x44] sm:$0xf]
    %v1142 = vld [vmem:[#allocation17 + $0x48] sm:$0xf]
    %v1143 = vld [vmem:[#allocation17 + $0x4c] sm:$0xf]
    %v1144 = vld [vmem:[#allocation17 + $0x50] sm:$0xf]
    %v1145 = vld [vmem:[#allocation17 + $0x54] sm:$0xf]
    %v1146 = vld [vmem:[#allocation17 + $0x58] sm:$0xf]
    %v1147 = vld [vmem:[#allocation17 + $0x5c] sm:$0xf]
    %v1148 = vld [vmem:[#allocation17 + $0x60] sm:$0xf]
    %v1149 = vld [vmem:[#allocation17 + $0x64] sm:$0xf]
    %v1150 = vld [vmem:[#allocation17 + $0x68] sm:$0xf]
    %v1151 = vld [vmem:[#allocation17 + $0x6c] sm:$0xf]
    %v1152 = vld [vmem:[#allocation17 + $0x70] sm:$0xf]
    %v1153 = vld [vmem:[#allocation17 + $0x74] sm:$0xf]
    %v1154 = vld [vmem:[#allocation17 + $0x78] sm:$0xf]
    %v1155 = vld [vmem:[#allocation17 + $0x7c] sm:$0xf]
    %v1156 = vld [vmem:[#allocation17 + $0x80] sm:$0xf]
    %v1157 = vld [vmem:[#allocation17 + $0x84] sm:$0xf]
    %v1158 = vld [vmem:[#allocation17 + $0x88] sm:$0xf]
    %v1159 = vld [vmem:[#allocation17 + $0x8c] sm:$0xf]
    %v1160 = vld [vmem:[#allocation17 + $0x90] sm:$0xf]
    %v1161 = vld [vmem:[#allocation17 + $0x94] sm:$0xf]
    %v1162 = vld [vmem:[#allocation17 + $0x98] sm:$0xf]
    %v1163 = vld [vmem:[#allocation17 + $0x9c] sm:$0xf]
    %v1164 = vld [vmem:[#allocation17 + $0xa0] sm:$0xf]
    %v1165 = vld [vmem:[#allocation17 + $0xa4] sm:$0xf]
    %v1166 = vld [vmem:[#allocation17 + $0xa8] sm:$0xf]
    %v1167 = vld [vmem:[#allocation17 + $0xac] sm:$0xf]
    %v1168 = vld [vmem:[#allocation17 + $0xb0] sm:$0xf]
    %v1169 = vld [vmem:[#allocation17 + $0xb4] sm:$0xf]
    %v1170 = vld [vmem:[#allocation17 + $0xb8] sm:$0xf]
    %v1171 = vld [vmem:[#allocation17 + $0xbc] sm:$0xf]
    %v1172 = vld [vmem:[#allocation17 + $0xc0] sm:$0xf]
    %v1173 = vld [vmem:[#allocation17 + $0xc4] sm:$0xf]
    %v1174 = vld [vmem:[#allocation17 + $0xc8] sm:$0xf]
    %v1175 = vld [vmem:[#allocation17 + $0xcc] sm:$0xf]
    %v1176 = vld [vmem:[#allocation17 + $0xd0] sm:$0xf]
    %v1177 = vld [vmem:[#allocation17 + $0xd4] sm:$0xf]
    %v1178 = vld [vmem:[#allocation17 + $0xd8] sm:$0xf]
    %v1179 = vld [vmem:[#allocation17 + $0xdc] sm:$0xf]
    %v1180 = vld [vmem:[#allocation17 + $0xe0] sm:$0xf]
    %v1181 = vld [vmem:[#allocation17 + $0xe4] sm:$0xf]
    %v1182 = vld [vmem:[#allocation17 + $0xe8] sm:$0xf]
    %v1183 = vld [vmem:[#allocation17 + $0xec] sm:$0xf]
    %v1184 = vld [vmem:[#allocation17 + $0xf0] sm:$0xf]
    %v1185 = vld [vmem:[#allocation17 + $0xf4] sm:$0xf]
    %v1186 = vld [vmem:[#allocation17 + $0xf8] sm:$0xf]
    %v1187 = vld [vmem:[#allocation17 + $0xfc] sm:$0xf]
    %v1188 = vpack.c.bf16 %v1002, %v1002
    %v1189 = vpack.c.bf16 %v1003, %v1003
    %v1190 = vpack.c.bf16 %v1004, %v1004
    %v1191 = vpack.c.bf16 %v1005, %v1005
    %v1192 = vld [vmem:[#allocation19] sm:$0xf]
    %v1193 = vld [vmem:[#allocation19 + $0x4] sm:$0xf]
    %v1194 = vld [vmem:[#allocation19 + $0x8] sm:$0xf]
    %v1195 = vld [vmem:[#allocation19 + $0xc] sm:$0xf]
    %v1196 = vld [vmem:[#allocation19 + $0x10] sm:$0xf]
    %v1197 = vld [vmem:[#allocation19 + $0x14] sm:$0xf]
    %v1198 = vld [vmem:[#allocation19 + $0x18] sm:$0xf]
    %v1199 = vld [vmem:[#allocation19 + $0x1c] sm:$0xf]
    %v1200 = vld [vmem:[#allocation19 + $0x20] sm:$0xf]
    %v1201 = vld [vmem:[#allocation19 + $0x24] sm:$0xf]
    %v1202 = vld [vmem:[#allocation19 + $0x28] sm:$0xf]
    %v1203 = vld [vmem:[#allocation19 + $0x2c] sm:$0xf]
    %v1204 = vld [vmem:[#allocation19 + $0x30] sm:$0xf]
    %v1205 = vld [vmem:[#allocation19 + $0x34] sm:$0xf]
    %v1206 = vld [vmem:[#allocation19 + $0x38] sm:$0xf]
    %v1207 = vld [vmem:[#allocation19 + $0x3c] sm:$0xf]
    %v1208 = vld [vmem:[#allocation19 + $0x40] sm:$0xf]
    %v1209 = vld [vmem:[#allocation19 + $0x44] sm:$0xf]
    %v1210 = vld [vmem:[#allocation19 + $0x48] sm:$0xf]
    %v1211 = vld [vmem:[#allocation19 + $0x4c] sm:$0xf]
    %v1212 = vld [vmem:[#allocation19 + $0x50] sm:$0xf]
    %v1213 = vld [vmem:[#allocation19 + $0x54] sm:$0xf]
    %v1214 = vld [vmem:[#allocation19 + $0x58] sm:$0xf]
    %v1215 = vld [vmem:[#allocation19 + $0x5c] sm:$0xf]
    %v1216 = vld [vmem:[#allocation19 + $0x60] sm:$0xf]
    %v1217 = vld [vmem:[#allocation19 + $0x64] sm:$0xf]
    %v1218 = vld [vmem:[#allocation19 + $0x68] sm:$0xf]
    %v1219 = vld [vmem:[#allocation19 + $0x6c] sm:$0xf]
    %v1220 = vld [vmem:[#allocation19 + $0x70] sm:$0xf]
    %v1221 = vld [vmem:[#allocation19 + $0x74] sm:$0xf]
    %v1222 = vld [vmem:[#allocation19 + $0x78] sm:$0xf]
    %v1223 = vld [vmem:[#allocation19 + $0x7c] sm:$0xf]
    %v1224 = vld [vmem:[#allocation19 + $0x80] sm:$0xf]
    %v1225 = vld [vmem:[#allocation19 + $0x84] sm:$0xf]
    %v1226 = vld [vmem:[#allocation19 + $0x88] sm:$0xf]
    %v1227 = vld [vmem:[#allocation19 + $0x8c] sm:$0xf]
    %v1228 = vld [vmem:[#allocation19 + $0x90] sm:$0xf]
    %v1229 = vld [vmem:[#allocation19 + $0x94] sm:$0xf]
    %v1230 = vld [vmem:[#allocation19 + $0x98] sm:$0xf]
    %v1231 = vld [vmem:[#allocation19 + $0x9c] sm:$0xf]
    %v1232 = vld [vmem:[#allocation19 + $0xa0] sm:$0xf]
    %v1233 = vld [vmem:[#allocation19 + $0xa4] sm:$0xf]
    %v1234 = vld [vmem:[#allocation19 + $0xa8] sm:$0xf]
    %v1235 = vld [vmem:[#allocation19 + $0xac] sm:$0xf]
    %v1236 = vld [vmem:[#allocation19 + $0xb0] sm:$0xf]
    %v1237 = vld [vmem:[#allocation19 + $0xb4] sm:$0xf]
    %v1238 = vld [vmem:[#allocation19 + $0xb8] sm:$0xf]
    %v1239 = vld [vmem:[#allocation19 + $0xbc] sm:$0xf]
    %v1240 = vld [vmem:[#allocation19 + $0xc0] sm:$0xf]
    %v1241 = vld [vmem:[#allocation19 + $0xc4] sm:$0xf]
    %v1242 = vld [vmem:[#allocation19 + $0xc8] sm:$0xf]
    %v1243 = vld [vmem:[#allocation19 + $0xcc] sm:$0xf]
    %v1244 = vld [vmem:[#allocation19 + $0xd0] sm:$0xf]
    %v1245 = vld [vmem:[#allocation19 + $0xd4] sm:$0xf]
    %v1246 = vld [vmem:[#allocation19 + $0xd8] sm:$0xf]
    %v1247 = vld [vmem:[#allocation19 + $0xdc] sm:$0xf]
    %v1248 = vld [vmem:[#allocation19 + $0xe0] sm:$0xf]
    %v1249 = vld [vmem:[#allocation19 + $0xe4] sm:$0xf]
    %v1250 = vld [vmem:[#allocation19 + $0xe8] sm:$0xf]
    %v1251 = vld [vmem:[#allocation19 + $0xec] sm:$0xf]
    %v1252 = vld [vmem:[#allocation19 + $0xf0] sm:$0xf]
    %v1253 = vld [vmem:[#allocation19 + $0xf4] sm:$0xf]
    %v1254 = vld [vmem:[#allocation19 + $0xf8] sm:$0xf]
    %v1255 = vld [vmem:[#allocation19 + $0xfc] sm:$0xf]
    %v1320 = vunpack.c.l.b16 %v1192
    %v1321 = vunpack.c.l.b16 %v1193
    %v1322 = vunpack.c.l.b16 %v1194
    %v1323 = vunpack.c.l.b16 %v1195
    %v1324 = vunpack.c.l.b16 %v1196
    %v1325 = vunpack.c.l.b16 %v1197
    %v1326 = vunpack.c.l.b16 %v1198
    %v1327 = vunpack.c.l.b16 %v1199
    %v1328 = vunpack.c.l.b16 %v1200
    %v1329 = vunpack.c.l.b16 %v1201
    %v1330 = vunpack.c.l.b16 %v1202
    %v1331 = vunpack.c.l.b16 %v1203
    %v1332 = vunpack.c.l.b16 %v1204
    %v1333 = vunpack.c.l.b16 %v1205
    %v1334 = vunpack.c.l.b16 %v1206
    %v1335 = vunpack.c.l.b16 %v1207
    %v1336 = vunpack.c.l.b16 %v1208
    %v1337 = vunpack.c.l.b16 %v1209
    %v1338 = vunpack.c.l.b16 %v1210
    %v1339 = vunpack.c.l.b16 %v1211
    %v1340 = vunpack.c.l.b16 %v1212
    %v1341 = vunpack.c.l.b16 %v1213
    %v1342 = vunpack.c.l.b16 %v1214
    %v1343 = vunpack.c.l.b16 %v1215
    %v1344 = vunpack.c.l.b16 %v1216
    %v1345 = vunpack.c.l.b16 %v1217
    %v1346 = vunpack.c.l.b16 %v1218
    %v1347 = vunpack.c.l.b16 %v1219
    %v1348 = vunpack.c.l.b16 %v1220
    %v1349 = vunpack.c.l.b16 %v1221
    %v1350 = vunpack.c.l.b16 %v1222
    %v1351 = vunpack.c.l.b16 %v1223
    %v1352 = vunpack.c.l.b16 %v1224
    %v1353 = vunpack.c.l.b16 %v1225
    %v1354 = vunpack.c.l.b16 %v1226
    %v1355 = vunpack.c.l.b16 %v1227
    %v1356 = vunpack.c.l.b16 %v1228
    %v1357 = vunpack.c.l.b16 %v1229
    %v1358 = vunpack.c.l.b16 %v1230
    %v1359 = vunpack.c.l.b16 %v1231
    %v1360 = vunpack.c.l.b16 %v1232
    %v1361 = vunpack.c.l.b16 %v1233
    %v1362 = vunpack.c.l.b16 %v1234
    %v1363 = vunpack.c.l.b16 %v1235
    %v1364 = vunpack.c.l.b16 %v1236
    %v1365 = vunpack.c.l.b16 %v1237
    %v1366 = vunpack.c.l.b16 %v1238
    %v1367 = vunpack.c.l.b16 %v1239
    %v1368 = vunpack.c.l.b16 %v1240
    %v1369 = vunpack.c.l.b16 %v1241
    %v1370 = vunpack.c.l.b16 %v1242
    %v1371 = vunpack.c.l.b16 %v1243
    %v1372 = vunpack.c.l.b16 %v1244
    %v1373 = vunpack.c.l.b16 %v1245
    %v1374 = vunpack.c.l.b16 %v1246
    %v1375 = vunpack.c.l.b16 %v1247
    %v1376 = vunpack.c.l.b16 %v1248
    %v1377 = vunpack.c.l.b16 %v1249
    %v1378 = vunpack.c.l.b16 %v1250
    %v1379 = vunpack.c.l.b16 %v1251
    %v1380 = vunpack.c.l.b16 %v1252
    %v1381 = vunpack.c.l.b16 %v1253
    %v1382 = vunpack.c.l.b16 %v1254
    %v1383 = vunpack.c.l.b16 %v1255
    %v1384 = vpack.c.b16 %v1321, %v1320
    %v1385 = vpack.c.b16 %v1323, %v1322
    %v1386 = vpack.c.b16 %v1325, %v1324
    %v1387 = vpack.c.b16 %v1327, %v1326
    %v1388 = vpack.c.b16 %v1329, %v1328
    %v1389 = vpack.c.b16 %v1331, %v1330
    %v1390 = vpack.c.b16 %v1333, %v1332
    %v1391 = vpack.c.b16 %v1335, %v1334
    %v1392 = vpack.c.b16 %v1337, %v1336
    %v1393 = vpack.c.b16 %v1339, %v1338
    %v1394 = vpack.c.b16 %v1341, %v1340
    %v1395 = vpack.c.b16 %v1343, %v1342
    %v1396 = vpack.c.b16 %v1345, %v1344
    %v1397 = vpack.c.b16 %v1347, %v1346
    %v1398 = vpack.c.b16 %v1349, %v1348
    %v1399 = vpack.c.b16 %v1351, %v1350
    %v1400 = vpack.c.b16 %v1353, %v1352
    %v1401 = vpack.c.b16 %v1355, %v1354
    %v1402 = vpack.c.b16 %v1357, %v1356
    %v1403 = vpack.c.b16 %v1359, %v1358
    %v1404 = vpack.c.b16 %v1361, %v1360
    %v1405 = vpack.c.b16 %v1363, %v1362
    %v1406 = vpack.c.b16 %v1365, %v1364
    %v1407 = vpack.c.b16 %v1367, %v1366
    %v1408 = vpack.c.b16 %v1369, %v1368
    %v1409 = vpack.c.b16 %v1371, %v1370
    %v1410 = vpack.c.b16 %v1373, %v1372
    %v1411 = vpack.c.b16 %v1375, %v1374
    %v1412 = vpack.c.b16 %v1377, %v1376
    %v1413 = vpack.c.b16 %v1379, %v1378
    %v1414 = vpack.c.b16 %v1381, %v1380
    %v1415 = vpack.c.b16 %v1383, %v1382
    %1448 = vmatprep.subr.bf16.mxu0 0
    %1449 = vmatpush1.bf16.msra.mxu0 %v1384
    %1450 = vmatprep.subr.bf16.mxu0 0
    %1451 = vmatpush1.bf16.msra.mxu0 %v1385
    %1452 = vmatprep.subr.bf16.mxu0 0
    %1453 = vmatpush1.bf16.msra.mxu0 %v1386
    %1454 = vmatprep.subr.bf16.mxu0 0
    %1455 = vmatpush1.bf16.msra.mxu0 %v1387
    %1456 = vmatprep.subr.bf16.mxu0 0
    %1457 = vmatpush1.bf16.msra.mxu0 %v1388
    %1458 = vmatprep.subr.bf16.mxu0 0
    %1459 = vmatpush1.bf16.msra.mxu0 %v1389
    %1460 = vmatprep.subr.bf16.mxu0 0
    %1461 = vmatpush1.bf16.msra.mxu0 %v1390
    %1462 = vmatprep.subr.bf16.mxu0 0
    %1463 = vmatpush1.bf16.msra.mxu0 %v1391
    %1464 = vmatprep.subr.bf16.mxu0 0
    %1465 = vmatpush1.bf16.msra.mxu0 %v1392
    %1466 = vmatprep.subr.bf16.mxu0 0
    %1467 = vmatpush1.bf16.msra.mxu0 %v1393
    %1468 = vmatprep.subr.bf16.mxu0 0
    %1469 = vmatpush1.bf16.msra.mxu0 %v1394
    %1470 = vmatprep.subr.bf16.mxu0 0
    %1471 = vmatpush1.bf16.msra.mxu0 %v1395
    %1472 = vmatprep.subr.bf16.mxu0 0
    %1473 = vmatpush1.bf16.msra.mxu0 %v1396
    %1474 = vmatprep.subr.bf16.mxu0 0
    %1475 = vmatpush1.bf16.msra.mxu0 %v1397
    %1476 = vmatprep.subr.bf16.mxu0 0
    %1477 = vmatpush1.bf16.msra.mxu0 %v1398
    %1478 = vmatprep.subr.bf16.mxu0 0
    %1479 = vmatpush1.bf16.msra.mxu0 %v1399
    %1480 = vmatprep.mubr.bf16.mxu0 %v1189
    %1481 = vmatmul.mubr.bf16.gmra.mrb[0].mxu0 %v1188
    %v1482 = vpop.f32.mrb[0].mxu0
    %v1483 = vadd.f32 0.0, %v1482
    %v1484 = vpop.f32.mrb[0].mxu0
    %v1485 = vpop.f32.mrb[0].mxu0
    %v1486 = vpop.f32.mrb[0].mxu0
    %1487 = vdwg.mxu0
    %1488 = vmatprep.subr.bf16.mxu0 0
    %1489 = vmatpush1.bf16.msra.mxu0 %v1400
    %1490 = vmatprep.subr.bf16.mxu0 0
    %1491 = vmatpush1.bf16.msra.mxu0 %v1401
    %1492 = vmatprep.subr.bf16.mxu0 0
    %1493 = vmatpush1.bf16.msra.mxu0 %v1402
    %1494 = vmatprep.subr.bf16.mxu0 0
    %1495 = vmatpush1.bf16.msra.mxu0 %v1403
    %1496 = vmatprep.subr.bf16.mxu0 0
    %1497 = vmatpush1.bf16.msra.mxu0 %v1404
    %1498 = vmatprep.subr.bf16.mxu0 0
    %1499 = vmatpush1.bf16.msra.mxu0 %v1405
    %1500 = vmatprep.subr.bf16.mxu0 0
    %1501 = vmatpush1.bf16.msra.mxu0 %v1406
    %1502 = vmatprep.subr.bf16.mxu0 0
    %1503 = vmatpush1.bf16.msra.mxu0 %v1407
    %1504 = vmatprep.subr.bf16.mxu0 0
    %1505 = vmatpush1.bf16.msra.mxu0 %v1408
    %1506 = vmatprep.subr.bf16.mxu0 0
    %1507 = vmatpush1.bf16.msra.mxu0 %v1409
    %1508 = vmatprep.subr.bf16.mxu0 0
    %1509 = vmatpush1.bf16.msra.mxu0 %v1410
    %1510 = vmatprep.subr.bf16.mxu0 0
    %1511 = vmatpush1.bf16.msra.mxu0 %v1411
    %1512 = vmatprep.subr.bf16.mxu0 0
    %1513 = vmatpush1.bf16.msra.mxu0 %v1412
    %1514 = vmatprep.subr.bf16.mxu0 0
    %1515 = vmatpush1.bf16.msra.mxu0 %v1413
    %1516 = vmatprep.subr.bf16.mxu0 0
    %1517 = vmatpush1.bf16.msra.mxu0 %v1414
    %1518 = vmatprep.subr.bf16.mxu0 0
    %1519 = vmatpush1.bf16.msra.mxu0 %v1415
    %1520 = vmatprep.mubr.bf16.mxu0 %v1191
    %1521 = vmatmul.mubr.bf16.gmra.mrb[0].mxu0 %v1190
    %v1522 = vpop.f32.mrb[0].mxu0
    %v1523 = vadd.f32 %v1483, %v1522
    %v1524 = vpop.f32.mrb[0].mxu0
    %v1525 = vpop.f32.mrb[0].mxu0
    %v1526 = vpop.f32.mrb[0].mxu0
    %1527 = vdwg.mxu0
    %v1592 = vunpack.c.l.b16 %v1124
    %v1593 = vunpack.c.l.b16 %v1125
    %v1594 = vunpack.c.l.b16 %v1126
    %v1595 = vunpack.c.l.b16 %v1127
    %v1596 = vunpack.c.l.b16 %v1128
    %v1597 = vunpack.c.l.b16 %v1129
    %v1598 = vunpack.c.l.b16 %v1130
    %v1599 = vunpack.c.l.b16 %v1131
    %v1600 = vunpack.c.l.b16 %v1132
    %v1601 = vunpack.c.l.b16 %v1133
    %v1602 = vunpack.c.l.b16 %v1134
    %v1603 = vunpack.c.l.b16 %v1135
    %v1604 = vunpack.c.l.b16 %v1136
    %v1605 = vunpack.c.l.b16 %v1137
    %v1606 = vunpack.c.l.b16 %v1138
    %v1607 = vunpack.c.l.b16 %v1139
    %v1608 = vunpack.c.l.b16 %v1140
    %v1609 = vunpack.c.l.b16 %v1141
    %v1610 = vunpack.c.l.b16 %v1142
    %v1611 = vunpack.c.l.b16 %v1143
    %v1612 = vunpack.c.l.b16 %v1144
    %v1613 = vunpack.c.l.b16 %v1145
    %v1614 = vunpack.c.l.b16 %v1146
    %v1615 = vunpack.c.l.b16 %v1147
    %v1616 = vunpack.c.l.b16 %v1148
    %v1617 = vunpack.c.l.b16 %v1149
    %v1618 = vunpack.c.l.b16 %v1150
    %v1619 = vunpack.c.l.b16 %v1151
    %v1620 = vunpack.c.l.b16 %v1152
    %v1621 = vunpack.c.l.b16 %v1153
    %v1622 = vunpack.c.l.b16 %v1154
    %v1623 = vunpack.c.l.b16 %v1155
    %v1624 = vunpack.c.l.b16 %v1156
    %v1625 = vunpack.c.l.b16 %v1157
    %v1626 = vunpack.c.l.b16 %v1158
    %v1627 = vunpack.c.l.b16 %v1159
    %v1628 = vunpack.c.l.b16 %v1160
    %v1629 = vunpack.c.l.b16 %v1161
    %v1630 = vunpack.c.l.b16 %v1162
    %v1631 = vunpack.c.l.b16 %v1163
    %v1632 = vunpack.c.l.b16 %v1164
    %v1633 = vunpack.c.l.b16 %v1165
    %v1634 = vunpack.c.l.b16 %v1166
    %v1635 = vunpack.c.l.b16 %v1167
    %v1636 = vunpack.c.l.b16 %v1168
    %v1637 = vunpack.c.l.b16 %v1169
    %v1638 = vunpack.c.l.b16 %v1170
    %v1639 = vunpack.c.l.b16 %v1171
    %v1640 = vunpack.c.l.b16 %v1172
    %v1641 = vunpack.c.l.b16 %v1173
    %v1642 = vunpack.c.l.b16 %v1174
    %v1643 = vunpack.c.l.b16 %v1175
    %v1644 = vunpack.c.l.b16 %v1176
    %v1645 = vunpack.c.l.b16 %v1177
    %v1646 = vunpack.c.l.b16 %v1178
    %v1647 = vunpack.c.l.b16 %v1179
    %v1648 = vunpack.c.l.b16 %v1180
    %v1649 = vunpack.c.l.b16 %v1181
    %v1650 = vunpack.c.l.b16 %v1182
    %v1651 = vunpack.c.l.b16 %v1183
    %v1652 = vunpack.c.l.b16 %v1184
    %v1653 = vunpack.c.l.b16 %v1185
    %v1654 = vunpack.c.l.b16 %v1186
    %v1655 = vunpack.c.l.b16 %v1187
    %v1656 = vpack.c.b16 %v1593, %v1592
    %v1657 = vpack.c.b16 %v1595, %v1594
    %v1658 = vpack.c.b16 %v1597, %v1596
    %v1659 = vpack.c.b16 %v1599, %v1598
    %v1660 = vpack.c.b16 %v1601, %v1600
    %v1661 = vpack.c.b16 %v1603, %v1602
    %v1662 = vpack.c.b16 %v1605, %v1604
    %v1663 = vpack.c.b16 %v1607, %v1606
    %v1664 = vpack.c.b16 %v1609, %v1608
    %v1665 = vpack.c.b16 %v1611, %v1610
    %v1666 = vpack.c.b16 %v1613, %v1612
    %v1667 = vpack.c.b16 %v1615, %v1614
    %v1668 = vpack.c.b16 %v1617, %v1616
    %v1669 = vpack.c.b16 %v1619, %v1618
    %v1670 = vpack.c.b16 %v1621, %v1620
    %v1671 = vpack.c.b16 %v1623, %v1622
    %v1672 = vpack.c.b16 %v1625, %v1624
    %v1673 = vpack.c.b16 %v1627, %v1626
    %v1674 = vpack.c.b16 %v1629, %v1628
    %v1675 = vpack.c.b16 %v1631, %v1630
    %v1676 = vpack.c.b16 %v1633, %v1632
    %v1677 = vpack.c.b16 %v1635, %v1634
    %v1678 = vpack.c.b16 %v1637, %v1636
    %v1679 = vpack.c.b16 %v1639, %v1638
    %v1680 = vpack.c.b16 %v1641, %v1640
    %v1681 = vpack.c.b16 %v1643, %v1642
    %v1682 = vpack.c.b16 %v1645, %v1644
    %v1683 = vpack.c.b16 %v1647, %v1646
    %v1684 = vpack.c.b16 %v1649, %v1648
    %v1685 = vpack.c.b16 %v1651, %v1650
    %v1686 = vpack.c.b16 %v1653, %v1652
    %v1687 = vpack.c.b16 %v1655, %v1654
    %1720 = vmatprep.subr.bf16.mxu0 0
    %1721 = vmatpush1.bf16.msra.mxu0 %v1656
    %1722 = vmatprep.subr.bf16.mxu0 0
    %1723 = vmatpush1.bf16.msra.mxu0 %v1657
    %1724 = vmatprep.subr.bf16.mxu0 0
    %1725 = vmatpush1.bf16.msra.mxu0 %v1658
    %1726 = vmatprep.subr.bf16.mxu0 0
    %1727 = vmatpush1.bf16.msra.mxu0 %v1659
    %1728 = vmatprep.subr.bf16.mxu0 0
    %1729 = vmatpush1.bf16.msra.mxu0 %v1660
    %1730 = vmatprep.subr.bf16.mxu0 0
    %1731 = vmatpush1.bf16.msra.mxu0 %v1661
    %1732 = vmatprep.subr.bf16.mxu0 0
    %1733 = vmatpush1.bf16.msra.mxu0 %v1662
    %1734 = vmatprep.subr.bf16.mxu0 0
    %1735 = vmatpush1.bf16.msra.mxu0 %v1663
    %1736 = vmatprep.subr.bf16.mxu0 0
    %1737 = vmatpush1.bf16.msra.mxu0 %v1664
    %1738 = vmatprep.subr.bf16.mxu0 0
    %1739 = vmatpush1.bf16.msra.mxu0 %v1665
    %1740 = vmatprep.subr.bf16.mxu0 0
    %1741 = vmatpush1.bf16.msra.mxu0 %v1666
    %1742 = vmatprep.subr.bf16.mxu0 0
    %1743 = vmatpush1.bf16.msra.mxu0 %v1667
    %1744 = vmatprep.subr.bf16.mxu0 0
    %1745 = vmatpush1.bf16.msra.mxu0 %v1668
    %1746 = vmatprep.subr.bf16.mxu0 0
    %1747 = vmatpush1.bf16.msra.mxu0 %v1669
    %1748 = vmatprep.subr.bf16.mxu0 0
    %1749 = vmatpush1.bf16.msra.mxu0 %v1670
    %1750 = vmatprep.subr.bf16.mxu0 0
    %1751 = vmatpush1.bf16.msra.mxu0 %v1671
    %1752 = vmatprep.mubr.bf16.mxu0 %v1121
    %1753 = vmatmul.mubr.bf16.gmra.mrb[0].mxu0 %v1120
    %v1754 = vpop.f32.mrb[0].mxu0
    %v1755 = vadd.f32 %v1523, %v1754
    %v1756 = vpop.f32.mrb[0].mxu0
    %v1757 = vpop.f32.mrb[0].mxu0
    %v1758 = vpop.f32.mrb[0].mxu0
    %1759 = vdwg.mxu0
    %1760 = vmatprep.subr.bf16.mxu0 0
    %1761 = vmatpush1.bf16.msra.mxu0 %v1672
    %1762 = vmatprep.subr.bf16.mxu0 0
    %1763 = vmatpush1.bf16.msra.mxu0 %v1673
    %1764 = vmatprep.subr.bf16.mxu0 0
    %1765 = vmatpush1.bf16.msra.mxu0 %v1674
    %1766 = vmatprep.subr.bf16.mxu0 0
    %1767 = vmatpush1.bf16.msra.mxu0 %v1675
    %1768 = vmatprep.subr.bf16.mxu0 0
    %1769 = vmatpush1.bf16.msra.mxu0 %v1676
    %1770 = vmatprep.subr.bf16.mxu0 0
    %1771 = vmatpush1.bf16.msra.mxu0 %v1677
    %1772 = vmatprep.subr.bf16.mxu0 0
    %1773 = vmatpush1.bf16.msra.mxu0 %v1678
    %1774 = vmatprep.subr.bf16.mxu0 0
    %1775 = vmatpush1.bf16.msra.mxu0 %v1679
    %1776 = vmatprep.subr.bf16.mxu0 0
    %1777 = vmatpush1.bf16.msra.mxu0 %v1680
    %1778 = vmatprep.subr.bf16.mxu0 0
    %1779 = vmatpush1.bf16.msra.mxu0 %v1681
    %1780 = vmatprep.subr.bf16.mxu0 0
    %1781 = vmatpush1.bf16.msra.mxu0 %v1682
    %1782 = vmatprep.subr.bf16.mxu0 0
    %1783 = vmatpush1.bf16.msra.mxu0 %v1683
    %1784 = vmatprep.subr.bf16.mxu0 0
    %1785 = vmatpush1.bf16.msra.mxu0 %v1684
    %1786 = vmatprep.subr.bf16.mxu0 0
    %1787 = vmatpush1.bf16.msra.mxu0 %v1685
    %1788 = vmatprep.subr.bf16.mxu0 0
    %1789 = vmatpush1.bf16.msra.mxu0 %v1686
    %1790 = vmatprep.subr.bf16.mxu0 0
    %1791 = vmatpush1.bf16.msra.mxu0 %v1687
    %1792 = vmatprep.mubr.bf16.mxu0 %v1123
    %1793 = vmatmul.mubr.bf16.gmra.mrb[0].mxu0 %v1122
    %v1794 = vpop.f32.mrb[0].mxu0
    %v1795 = vadd.f32 %v1755, %v1794
    %v1796 = vpop.f32.mrb[0].mxu0
    %v1797 = vpop.f32.mrb[0].mxu0
    %v1798 = vpop.f32.mrb[0].mxu0
    %1799 = vdwg.mxu0
    %v1800 = vpack.c.bf16 %v1119, %v1119
    %v1801 = vld [vmem:[#allocation20] sm:$0xf]
    %v1802 = vld [vmem:[#allocation20 + $0x4] sm:$0xf]
    %v1803 = vld [vmem:[#allocation20 + $0x8] sm:$0xf]
    %v1804 = vld [vmem:[#allocation20 + $0xc] sm:$0xf]
    %v1805 = vld [vmem:[#allocation20 + $0x10] sm:$0xf]
    %v1806 = vld [vmem:[#allocation20 + $0x14] sm:$0xf]
    %v1807 = vld [vmem:[#allocation20 + $0x18] sm:$0xf]
    %v1808 = vld [vmem:[#allocation20 + $0x1c] sm:$0xf]
    %v1809 = vld [vmem:[#allocation20 + $0x20] sm:$0xf]
    %v1810 = vld [vmem:[#allocation20 + $0x24] sm:$0xf]
    %v1811 = vld [vmem:[#allocation20 + $0x28] sm:$0xf]
    %v1812 = vld [vmem:[#allocation20 + $0x2c] sm:$0xf]
    %v1813 = vld [vmem:[#allocation20 + $0x30] sm:$0xf]
    %v1814 = vld [vmem:[#allocation20 + $0x34] sm:$0xf]
    %v1815 = vld [vmem:[#allocation20 + $0x38] sm:$0xf]
    %v1816 = vld [vmem:[#allocation20 + $0x3c] sm:$0xf]
    %v1833 = vunpack.c.l.b16 %v1801
    %v1834 = vunpack.c.l.b16 %v1802
    %v1835 = vunpack.c.l.b16 %v1803
    %v1836 = vunpack.c.l.b16 %v1804
    %v1837 = vunpack.c.l.b16 %v1805
    %v1838 = vunpack.c.l.b16 %v1806
    %v1839 = vunpack.c.l.b16 %v1807
    %v1840 = vunpack.c.l.b16 %v1808
    %v1841 = vunpack.c.l.b16 %v1809
    %v1842 = vunpack.c.l.b16 %v1810
    %v1843 = vunpack.c.l.b16 %v1811
    %v1844 = vunpack.c.l.b16 %v1812
    %v1845 = vunpack.c.l.b16 %v1813
    %v1846 = vunpack.c.l.b16 %v1814
    %v1847 = vunpack.c.l.b16 %v1815
    %v1848 = vunpack.c.l.b16 %v1816
    %v1849 = vpack.c.b16 %v1834, %v1833
    %v1850 = vpack.c.b16 %v1836, %v1835
    %v1851 = vpack.c.b16 %v1838, %v1837
    %v1852 = vpack.c.b16 %v1840, %v1839
    %v1853 = vpack.c.b16 %v1842, %v1841
    %v1854 = vpack.c.b16 %v1844, %v1843
    %v1855 = vpack.c.b16 %v1846, %v1845
    %v1856 = vpack.c.b16 %v1848, %v1847
    %1865 = vmatprep.subr.bf16.mxu0 0
    %1866 = vmatpush1.bf16.msra.mxu0 %v1849
    %1867 = vmatprep.subr.bf16.mxu0 0
    %1868 = vmatpush1.bf16.msra.mxu0 %v1850
    %1869 = vmatprep.subr.bf16.mxu0 0
    %1870 = vmatpush1.bf16.msra.mxu0 %v1851
    %1871 = vmatprep.subr.bf16.mxu0 0
    %1872 = vmatpush1.bf16.msra.mxu0 %v1852
    %1873 = vmatprep.subr.bf16.mxu0 0
    %1874 = vmatpush1.bf16.msra.mxu0 %v1853
    %1875 = vmatprep.subr.bf16.mxu0 0
    %1876 = vmatpush1.bf16.msra.mxu0 %v1854
    %1877 = vmatprep.subr.bf16.mxu0 0
    %1878 = vmatpush1.bf16.msra.mxu0 %v1855
    %1879 = vmatprep.subr.bf16.mxu0 0
    %1880 = vmatpush1.bf16.msra.mxu0 %v1856
    %1881 = vmatprep.subr.bf16.mxu0 0
    %1882 = vmatpush1.bf16.msra.mxu0 0
    %1883 = vmatprep.subr.bf16.mxu0 0
    %1884 = vmatpush1.bf16.msra.mxu0 0
    %1885 = vmatprep.subr.bf16.mxu0 0
    %1886 = vmatpush1.bf16.msra.mxu0 0
    %1887 = vmatprep.subr.bf16.mxu0 0
    %1888 = vmatpush1.bf16.msra.mxu0 0
    %1889 = vmatprep.subr.bf16.mxu0 0
    %1890 = vmatpush1.bf16.msra.mxu0 0
    %1891 = vmatprep.subr.bf16.mxu0 0
    %1892 = vmatpush1.bf16.msra.mxu0 0
    %1893 = vmatprep.subr.bf16.mxu0 0
    %1894 = vmatpush1.bf16.msra.mxu0 0
    %1895 = vmatprep.subr.bf16.mxu0 0
    %1896 = vmatpush1.bf16.msra.mxu0 0
    %1897 = vmatprep.mubr.bf16.mxu0 0
    %1898 = vmatmul.mubr.bf16.gmra.mrb[0].mxu0 %v1800
    %v1899 = vpop.f32.mrb[0].mxu0
    %v1900 = vadd.f32 0.0, %v1899
    %v1901 = vpop.f32.mrb[0].mxu0
    %v1902 = vpop.f32.mrb[0].mxu0
    %v1903 = vpop.f32.mrb[0].mxu0
    %1904 = vdwg.mxu0
    %v1905 = vadd.f32 %v1795, %v1900
    %v1906 = vld [vmem:[%s16] sm:$0x1]
    %v1908 = vlaneseq
    %v1909 = vshrl.u32 %v1908, 7
    %v1910 = vsub.s32 0, %v1909
    %v1911 = vrot.slane %v1906, %v1910
    %v1913 = vadd.f32 %v1905, %v1911
    %1914 = vst [vmem:[#allocation22] sm:$0xff] %v1913
    // Predicated region
    $region118: #{tpu_custom_call.1} parent=1 // pred_check
      _
    $region119: #{tpu_custom_call.1} parent=1 // pred_check_branch
      %1916 = sbr.rel (0) target = $region121
    $region120: #{tpu_custom_call.1} parent=1 // pred_region
      %s1918 = ssub.s32 128, 128
      %1919 = vsyncadd [#allocation4], %s1918
      %s1921 = sshll.u32 [#allocation22], 4
      %s1922 = int_to_ptr.vmem [resolvable:$true] %s1921
      %1924 = dma.vmem_to_hbm [thread:$0]  %s1922, 128, %s17, [#allocation4]
    $region121: #{tpu_custom_call.1} parent=1 // pred_fallthru
      _
    // Predicated region
    $region122: #{tpu_custom_call.1} parent=1 // pred_check
      _
    $region123: #{tpu_custom_call.1} parent=1 // pred_check_branch
      %1926 = sbr.rel (0) target = $region125
    $region124: #{tpu_custom_call.1} parent=1 // pred_region
      %1927 = dma.done [#allocation4], 128
    $region125: #{tpu_custom_call.1} parent=1 // pred_fallthru
      _
    %1928 = vsyncpa [#allocation3], 1
    %1929 = vsyncpa [#allocation6], 1
    %1930 = vsyncpa [#allocation9], 1
    %1931 = vsyncpa [#allocation12], 1
    %1932 = vsyncpa [#allocation15], 1
    %1933 = vsyncpa [#allocation18], 1
    %1934 = vsyncpa [#allocation21], 1
    %1935 = vsyncpa [#allocation4], 1

</llo_original>
